<compile_context>
chip_gen: v6e
topology: v6e:2x2x1
jax: 0.10.0
libtpu: 0.0.40
codegen_flags: <defaults>
</compile_context>

<pallas_src>
import jax
import jax.numpy as jnp
from jax.experimental import pallas as pl
from jax.experimental.pallas import tpu as pltpu

LRELU_SLOPE = 0.2
IN_EPS = 1e-5


def _mosaic_params(n_parallel=1):
    """dimension_semantics=("parallel",)*n  (guarded for older pltpu namespaces)."""
    sem = ("parallel",) * n_parallel
    cp = getattr(pltpu, "CompilerParams", None) or getattr(pltpu, "TPUCompilerParams", None)
    return cp(dimension_semantics=sem) if cp is not None else None


# ---------------------------------------------------------------------------
# Pallas kernels (one grid step == one sample)
# ---------------------------------------------------------------------------
def _conv_bias_lrelu_kernel(cols_ref, w_ref, b_ref, o_ref):
    """Y = X @ W + b ; LeakyReLU(0.2).  X:(HW,K) bf16, W:(K,C) bf16, b:(1,C) f32."""
    y = jnp.dot(cols_ref[...], w_ref[...], preferred_element_type=jnp.float32)
    y = y + b_ref[...]
    o_ref[...] = jnp.where(y >= 0.0, y, LRELU_SLOPE * y).astype(o_ref.dtype)


def _conv_in_lrelu_kernel(cols_ref, w_ref, g_ref, b_ref, o_ref):
    """Y = X @ W ; per-(sample,channel) InstanceNorm (affine) ; LeakyReLU(0.2).

    The matmul output (HW, C) for one sample has channels in lanes, so the IN
    statistics are a sublane reduction; gamma/beta broadcast along lanes.
    """
    y = jnp.dot(cols_ref[...], w_ref[...], preferred_element_type=jnp.float32)
    inv_hw = 1.0 / y.shape[0]
    mean = jnp.sum(y, axis=0, keepdims=True) * inv_hw
    ex2 = jnp.sum(y * y, axis=0, keepdims=True) * inv_hw
    var = jnp.maximum(ex2 - mean * mean, 0.0)                 # biased var (PyTorch IN)
    z = (y - mean) * jax.lax.rsqrt(var + IN_EPS) * g_ref[...] + b_ref[...]
    o_ref[...] = jnp.where(z >= 0.0, z, LRELU_SLOPE * z).astype(o_ref.dtype)


def _conv_in_lrelu_heads_kernel(cols_ref, w_ref, g_ref, b_ref, wadv_ref, wcls_ref,
                                feat_ref, adv_ref, cls_ref):
    """conv3 + InstanceNorm + LeakyReLU, plus both 4x4 valid-conv heads fused as a
    full reduction over the (16, C4) per-sample feature tile."""
    y = jnp.dot(cols_ref[...], w_ref[...], preferred_element_type=jnp.float32)
    inv_hw = 1.0 / y.shape[0]
    mean = jnp.sum(y, axis=0, keepdims=True) * inv_hw
    ex2 = jnp.sum(y * y, axis=0, keepdims=True) * inv_hw
    var = jnp.maximum(ex2 - mean * mean, 0.0)
    z = (y - mean) * jax.lax.rsqrt(var + IN_EPS) * g_ref[...] + b_ref[...]
    feat = jnp.where(z >= 0.0, z, LRELU_SLOPE * z)            # (16, C4) f32
    feat_ref[...] = feat
    adv_ref[...] = jnp.sum(feat * wadv_ref[...], keepdims=True)   # (1,1)
    cls_ref[...] = jnp.sum(feat * wcls_ref[...], keepdims=True)   # (1,1)


# ---------------------------------------------------------------------------
# pallas_call wrappers (grid over samples, "parallel")
# ---------------------------------------------------------------------------
def conv_bias_lrelu(cols, w, b, *, n_samples, hw):
    M, K = cols.shape
    C = w.shape[1]
    return pl.pallas_call(
        _conv_bias_lrelu_kernel,
        out_shape=jax.ShapeDtypeStruct((M, C), jnp.bfloat16),
        grid=(n_samples,),
        in_specs=[
            pl.BlockSpec((hw, K), lambda i: (i, 0)),
            pl.BlockSpec((K, C), lambda i: (0, 0)),
            pl.BlockSpec((1, C), lambda i: (0, 0)),
        ],
        out_specs=pl.BlockSpec((hw, C), lambda i: (i, 0)),
        compiler_params=_mosaic_params(),
    )(cols, w, b)


def conv_in_lrelu(cols, w, gamma, beta, *, n_samples, hw):
    M, K = cols.shape
    C = w.shape[1]
    return pl.pallas_call(
        _conv_in_lrelu_kernel,
        out_shape=jax.ShapeDtypeStruct((M, C), jnp.bfloat16),
        grid=(n_samples,),
        in_specs=[
            pl.BlockSpec((hw, K), lambda i: (i, 0)),
            pl.BlockSpec((K, C), lambda i: (0, 0)),
            pl.BlockSpec((1, C), lambda i: (0, 0)),
            pl.BlockSpec((1, C), lambda i: (0, 0)),
        ],
        out_specs=pl.BlockSpec((hw, C), lambda i: (i, 0)),
        compiler_params=_mosaic_params(),
    )(cols, w, gamma, beta)


def conv_in_lrelu_heads(cols, w, gamma, beta, w_adv, w_cls, *, n_samples, hw):
    M, K = cols.shape
    C = w.shape[1]
    return pl.pallas_call(
        _conv_in_lrelu_heads_kernel,
        out_shape=(
            jax.ShapeDtypeStruct((M, C), jnp.float32),        # feature map (returned)
            jax.ShapeDtypeStruct((n_samples, 1, 1), jnp.float32),  # adv head
            jax.ShapeDtypeStruct((n_samples, 1, 1), jnp.float32),  # cls head
        ),
        grid=(n_samples,),
        in_specs=[
            pl.BlockSpec((hw, K), lambda i: (i, 0)),
            pl.BlockSpec((K, C), lambda i: (0, 0)),
            pl.BlockSpec((1, C), lambda i: (0, 0)),
            pl.BlockSpec((1, C), lambda i: (0, 0)),
            pl.BlockSpec((hw, C), lambda i: (0, 0)),
            pl.BlockSpec((hw, C), lambda i: (0, 0)),
        ],
        out_specs=(
            pl.BlockSpec((hw, C), lambda i: (i, 0)),
            pl.BlockSpec((None, 1, 1), lambda i: (i, 0, 0)),
            pl.BlockSpec((None, 1, 1), lambda i: (i, 0, 0)),
        ),
        compiler_params=_mosaic_params(),
    )(cols, w, gamma, beta, w_adv, w_cls)


# ---------------------------------------------------------------------------
# Glue: channel-last im2col (no transposes) + weight packing
# ---------------------------------------------------------------------------
def im2col_nhwc(x, k, stride, pad):
    """x: (N,H,W,C) -> (N*Ho*Wo, k*k*C) patches in (kh, kw, C) order."""
    N, H, W, C = x.shape
    if pad:
        x = jnp.pad(x, ((0, 0), (pad, pad), (pad, pad), (0, 0)))
    Ho = (H + 2 * pad - k) // stride + 1
    Wo = (W + 2 * pad - k) // stride + 1
    patches = [
        x[:, di:di + stride * Ho:stride, dj:dj + stride * Wo:stride, :]
        for di in range(k) for dj in range(k)
    ]
    p = jnp.stack(patches, axis=3)                        # (N, Ho, Wo, k*k, C)
    return p.reshape(N * Ho * Wo, k * k * C), Ho, Wo


def _pack_conv_weight(w):
    """PyTorch (Cout,Cin,kh,kw) -> (kh*kw*Cin, Cout) bf16, matching im2col_nhwc order."""
    cout, cin, k, _ = w.shape
    return jnp.transpose(w, (2, 3, 1, 0)).reshape(k * k * cin, cout).astype(jnp.bfloat16)


# ---------------------------------------------------------------------------
# Discriminator forward
# ---------------------------------------------------------------------------
def discriminator_forward(params, x):
    N = x.shape[0]
    ndf = params["w1"].shape[0]
    c2 = params["w2"].shape[0]
    c4 = params["w3"].shape[0]

    # single layout conversion at the input; everything stays channel-last afterwards
    h = jnp.transpose(x, (0, 2, 3, 1)).astype(jnp.bfloat16)         # NCHW -> NHWC

    # --- conv1 (bias) + LeakyReLU -------------------------------------------------
    cols, H1, W1 = im2col_nhwc(h, 4, 2, 1)
    y1 = conv_bias_lrelu(
        cols, _pack_conv_weight(params["w1"]),
        params["b1"].reshape(1, ndf).astype(jnp.float32),
        n_samples=N, hw=H1 * W1)                                     # (N*H1*W1, ndf) bf16

    # --- conv2 (no bias) + InstanceNorm + LeakyReLU --------------------------------
    cols, H2, W2 = im2col_nhwc(y1.reshape(N, H1, W1, ndf), 4, 2, 1)
    y2 = conv_in_lrelu(
        cols, _pack_conv_weight(params["w2"]),
        params["g2"].reshape(1, c2).astype(jnp.float32),
        params["be2"].reshape(1, c2).astype(jnp.float32),
        n_samples=N, hw=H2 * W2)                                     # (N*H2*W2, 2ndf) bf16

    # --- conv3 (no bias) + InstanceNorm + LeakyReLU + both 4x4 heads ----------------
    cols, H3, W3 = im2col_nhwc(y2.reshape(N, H2, W2, c2), 4, 2, 1)
    assert H3 == 4 and W3 == 4, "heads are 4x4 valid convs; input spatial must be 32x32"
    # head weights (1, C4, 4, 4) -> (H3*W3, C4) matching the per-sample feature tile
    w_adv = jnp.transpose(params["wadv"][0], (1, 2, 0)).reshape(H3 * W3, c4).astype(jnp.float32)
    w_cls = jnp.transpose(params["wcls"][0], (1, 2, 0)).reshape(H3 * W3, c4).astype(jnp.float32)
    feat, adv, cls_ = conv_in_lrelu_heads(
        cols, _pack_conv_weight(params["w3"]),
        params["g3"].reshape(1, c4).astype(jnp.float32),
        params["be3"].reshape(1, c4).astype(jnp.float32),
        w_adv, w_cls, n_samples=N, hw=H3 * W3)

    x_feat = feat.reshape(N, H3, W3, c4).transpose(0, 3, 1, 2)       # NHWC -> NCHW (once)
    out_adv = adv.reshape(N, 1, 1, 1)
    out_cls = cls_.reshape(N, 1, 1, 1)
    return out_adv, out_cls, x_feat


# ---------------------------------------------------------------------------
# Pure-JAX f32 reference (for a loose numerical sanity check)
# ---------------------------------------------------------------------------
def _ref_forward(params, x):
    def conv(x, w, stride, pad):
        return jax.lax.conv_general_dilated(
            x, w, (stride, stride), [(pad, pad), (pad, pad)],
            dimension_numbers=("NCHW", "OIHW", "NCHW"))

    def lrelu(v):
        return jnp.where(v >= 0, v, LRELU_SLOPE * v)

    def inorm(v, g, b):
        m = jnp.mean(v, axis=(2, 3), keepdims=True)
        var = jnp.mean((v - m) ** 2, axis=(2, 3), keepdims=True)
        vn = (v - m) * jax.lax.rsqrt(var + IN_EPS)
        return vn * g[None, :, None, None] + b[None, :, None, None]

    h = lrelu(conv(x, params["w1"], 2, 1) + params["b1"][None, :, None, None])
    h = lrelu(inorm(conv(h, params["w2"], 2, 1), params["g2"], params["be2"]))
    h = lrelu(inorm(conv(h, params["w3"], 2, 1), params["g3"], params["be3"]))
    return conv(h, params["wadv"], 1, 0), conv(h, params["wcls"], 1, 0), h


# ---------------------------------------------------------------------------
# Deterministic parameter construction (synthetic, no checkpoint load)
# ---------------------------------------------------------------------------
def init_params(key, nc=3, ndf=16):
    ks = jax.random.split(key, 8)

    def nrm(k, shape, scale=0.05):
        return (scale * jax.random.normal(k, shape)).astype(jnp.float32)

    return {
        "w1": nrm(ks[0], (ndf, nc, 4, 4)),
        "b1": nrm(ks[1], (ndf,)),
        "w2": nrm(ks[2], (ndf * 2, ndf, 4, 4)),
        "g2": (1.0 + 0.1 * jax.random.normal(ks[3], (ndf * 2,))).astype(jnp.float32),
        "be2": nrm(ks[4], (ndf * 2,), scale=0.1),
        "w3": nrm(ks[5], (ndf * 4, ndf * 2, 4, 4)),
        "g3": jnp.ones((ndf * 4,), jnp.float32),
        "be3": jnp.zeros((ndf * 4,), jnp.float32),
        "wadv": nrm(ks[6], (1, ndf * 4, 4, 4)),
        "wcls": nrm(ks[7], (1, ndf * 4, 4, 4)),
    }


if __name__ == "__main__":
    key = jax.random.PRNGKey(0)
    kx, kp = jax.random.split(key)

    # CIFAR-style 32x32 spatial is required so the conv chain ends at 4x4 before the
    # final 4x4 valid-conv heads; keep channels small.
    N, NC, NDF = 2, 3, 16
    x = jax.random.normal(kx, (N, NC, 32, 32), dtype=jnp.float32)
    params = init_params(kp, nc=NC, ndf=NDF)

    fwd = jax.jit(discriminator_forward)
    out_adv, out_cls, feat = fwd(params, x)
    jax.block_until_ready((out_adv, out_cls, feat))

    assert out_adv.shape == (N, 1, 1, 1)
    assert out_cls.shape == (N, 1, 1, 1)
    assert feat.shape == (N, NDF * 4, 4, 4)
    assert bool(jnp.all(jnp.isfinite(out_adv)))
    assert bool(jnp.all(jnp.isfinite(out_cls)))
    assert bool(jnp.all(jnp.isfinite(feat)))

    # loose numerical check vs. pure-JAX f32 reference (kernel feeds the MXU bf16 operands)
    r_adv, r_cls, r_feat = _ref_forward(params, x)
    assert float(jnp.max(jnp.abs(out_adv - r_adv))) < 0.5
    assert float(jnp.max(jnp.abs(out_cls - r_cls))) < 0.5
    assert float(jnp.max(jnp.abs(feat - r_feat))) < 0.5

    print("KERNEL_OK")
</pallas_src>

<mosaic_0001>
module attributes {stable_mosaic.version = 11 : i64} {
  func.func @_conv_bias_lrelu_kernel(%arg0: i32, %arg1: memref<256x48xbf16, #tpu.memory_space<vmem>>, %arg2: memref<48x16xbf16, #tpu.memory_space<vmem>>, %arg3: memref<1x16xf32, #tpu.memory_space<vmem>>, %arg4: memref<256x16xbf16, #tpu.memory_space<vmem>>) attributes {dimension_semantics = [#tpu.dimension_semantics<parallel>], iteration_bounds = array<i64: 2>, scalar_prefetch = 0 : i64, scratch_operands = 0 : i64, tpu.core_type = #tpu.core_type<tc>, window_params = [{transform_indices = @transform_0, window_bounds = array<i64: 256, 48>}, {pipeline_mode = #tpu.pipeline_mode<synchronous>, transform_indices = @transform_1, window_bounds = array<i64: 48, 16>}, {pipeline_mode = #tpu.pipeline_mode<synchronous>, transform_indices = @transform_2, window_bounds = array<i64: 1, 16>}, {transform_indices = @transform_3, window_bounds = array<i64: 256, 16>}]} {
    %c0 = arith.constant 0 : index
    %c0_0 = arith.constant 0 : index
    %0 = vector.load %arg1[%c0, %c0_0] : memref<256x48xbf16, #tpu.memory_space<vmem>>, vector<256x48xbf16>
    %c0_1 = arith.constant 0 : index
    %c0_2 = arith.constant 0 : index
    %1 = vector.load %arg2[%c0_1, %c0_2] : memref<48x16xbf16, #tpu.memory_space<vmem>>, vector<48x16xbf16>
    %cst = arith.constant dense<0.000000e+00> : vector<256x16xf32>
    %2 = tpu.matmul %0, %1, %cst {dimension_numbers = #tpu.dot_dimension_numbers<[1], [0], [0], [1], [0, 0, 1, 1], [], []>} : vector<256x48xbf16>, vector<48x16xbf16>, vector<256x16xf32> -> vector<256x16xf32>
    %c0_3 = arith.constant 0 : index
    %c0_4 = arith.constant 0 : index
    %3 = vector.load %arg3[%c0_3, %c0_4] : memref<1x16xf32, #tpu.memory_space<vmem>>, vector<1x16xf32>
    %4 = vector.broadcast %3 : vector<1x16xf32> to vector<256x16xf32>
    %5 = arith.addf %2, %4 : vector<256x16xf32>
    %cst_5 = arith.constant 0.000000e+00 : f32
    %6 = vector.broadcast %cst_5 : f32 to vector<256x16xf32>
    %7 = arith.cmpf oge, %5, %6 : vector<256x16xf32>
    %cst_6 = arith.constant 2.000000e-01 : f32
    %8 = vector.broadcast %cst_6 : f32 to vector<256x16xf32>
    %9 = arith.mulf %8, %5 : vector<256x16xf32>
    %10 = arith.select %7, %5, %9 : vector<256x16xi1>, vector<256x16xf32>
    %11 = arith.truncf %10 : vector<256x16xf32> to vector<256x16xbf16>
    %c0_7 = arith.constant 0 : index
    %c0_8 = arith.constant 0 : index
    %12 = vector.load %arg4[%c0_7, %c0_8] : memref<256x16xbf16, #tpu.memory_space<vmem>>, vector<256x16xbf16>
    tpu.vector_store %arg4[%c0_7, %c0_8], %11 {strides = array<i32>} : memref<256x16xbf16, #tpu.memory_space<vmem>>, vector<256x16xbf16>,
    return
  }
  func.func @transform_0(%arg0: i32) -> (i32, i32) {
    %c0_i32 = arith.constant 0 : i32
    %c0_i32_0 = arith.constant 0 : i32
    return %arg0, %c0_i32 : i32, i32
  }
  func.func @transform_1(%arg0: i32) -> (i32, i32) {
    %c0_i32 = arith.constant 0 : i32
    %c0_i32_0 = arith.constant 0 : i32
    %c0_i32_1 = arith.constant 0 : i32
    return %c0_i32, %c0_i32_0 : i32, i32
  }
  func.func @transform_2(%arg0: i32) -> (i32, i32) {
    %c0_i32 = arith.constant 0 : i32
    %c0_i32_0 = arith.constant 0 : i32
    %c0_i32_1 = arith.constant 0 : i32
    return %c0_i32, %c0_i32_0 : i32, i32
  }
  func.func @transform_3(%arg0: i32) -> (i32, i32) {
    %c0_i32 = arith.constant 0 : i32
    %c0_i32_0 = arith.constant 0 : i32
    return %arg0, %c0_i32 : i32, i32
  }
}

module attributes {stable_mosaic.version = 11 : i64} {
  func.func @_conv_in_lrelu_kernel(%arg0: i32, %arg1: memref<64x256xbf16, #tpu.memory_space<vmem>>, %arg2: memref<256x32xbf16, #tpu.memory_space<vmem>>, %arg3: memref<1x32xf32, #tpu.memory_space<vmem>>, %arg4: memref<1x32xf32, #tpu.memory_space<vmem>>, %arg5: memref<64x32xbf16, #tpu.memory_space<vmem>>) attributes {dimension_semantics = [#tpu.dimension_semantics<parallel>], iteration_bounds = array<i64: 2>, scalar_prefetch = 0 : i64, scratch_operands = 0 : i64, tpu.core_type = #tpu.core_type<tc>, window_params = [{transform_indices = @transform_0, window_bounds = array<i64: 64, 256>}, {pipeline_mode = #tpu.pipeline_mode<synchronous>, transform_indices = @transform_1, window_bounds = array<i64: 256, 32>}, {pipeline_mode = #tpu.pipeline_mode<synchronous>, transform_indices = @transform_2, window_bounds = array<i64: 1, 32>}, {pipeline_mode = #tpu.pipeline_mode<synchronous>, transform_indices = @transform_3, window_bounds = array<i64: 1, 32>}, {transform_indices = @transform_4, window_bounds = array<i64: 64, 32>}]} {
    %c0 = arith.constant 0 : index
    %c0_0 = arith.constant 0 : index
    %0 = vector.load %arg1[%c0, %c0_0] : memref<64x256xbf16, #tpu.memory_space<vmem>>, vector<64x256xbf16>
    %c0_1 = arith.constant 0 : index
    %c0_2 = arith.constant 0 : index
    %1 = vector.load %arg2[%c0_1, %c0_2] : memref<256x32xbf16, #tpu.memory_space<vmem>>, vector<256x32xbf16>
    %cst = arith.constant dense<0.000000e+00> : vector<64x32xf32>
    %2 = tpu.matmul %0, %1, %cst {dimension_numbers = #tpu.dot_dimension_numbers<[1], [0], [0], [1], [0, 0, 1, 1], [], []>} : vector<64x256xbf16>, vector<256x32xbf16>, vector<64x32xf32> -> vector<64x32xf32>
    %cst_3 = arith.constant dense<0.000000e+00> : vector<32xf32>
    %3 = vector.multi_reduction <add>, %2, %cst_3 [0] : vector<64x32xf32> to vector<32xf32>
    %4 = vector.shape_cast %3 : vector<32xf32> to vector<1x32xf32>
    %cst_4 = arith.constant 1.562500e-02 : f32
    %5 = vector.broadcast %cst_4 : f32 to vector<1x32xf32>
    %6 = arith.mulf %4, %5 : vector<1x32xf32>
    %7 = arith.mulf %2, %2 : vector<64x32xf32>
    %cst_5 = arith.constant dense<0.000000e+00> : vector<32xf32>
    %8 = vector.multi_reduction <add>, %7, %cst_5 [0] : vector<64x32xf32> to vector<32xf32>
    %9 = vector.shape_cast %8 : vector<32xf32> to vector<1x32xf32>
    %cst_6 = arith.constant 1.562500e-02 : f32
    %10 = vector.broadcast %cst_6 : f32 to vector<1x32xf32>
    %11 = arith.mulf %9, %10 : vector<1x32xf32>
    %12 = arith.mulf %6, %6 : vector<1x32xf32>
    %13 = arith.subf %11, %12 : vector<1x32xf32>
    %cst_7 = arith.constant 0.000000e+00 : f32
    %14 = vector.broadcast %cst_7 : f32 to vector<1x32xf32>
    %15 = arith.maximumf %13, %14 : vector<1x32xf32>
    %16 = vector.broadcast %6 : vector<1x32xf32> to vector<64x32xf32>
    %17 = arith.subf %2, %16 : vector<64x32xf32>
    %cst_8 = arith.constant 9.99999974E-6 : f32
    %18 = vector.broadcast %cst_8 : f32 to vector<1x32xf32>
    %19 = arith.addf %15, %18 : vector<1x32xf32>
    %20 = math.rsqrt %19 : vector<1x32xf32>
    %21 = vector.broadcast %20 : vector<1x32xf32> to vector<64x32xf32>
    %22 = arith.mulf %17, %21 : vector<64x32xf32>
    %c0_9 = arith.constant 0 : index
    %c0_10 = arith.constant 0 : index
    %23 = vector.load %arg3[%c0_9, %c0_10] : memref<1x32xf32, #tpu.memory_space<vmem>>, vector<1x32xf32>
    %24 = vector.broadcast %23 : vector<1x32xf32> to vector<64x32xf32>
    %25 = arith.mulf %22, %24 : vector<64x32xf32>
    %c0_11 = arith.constant 0 : index
    %c0_12 = arith.constant 0 : index
    %26 = vector.load %arg4[%c0_11, %c0_12] : memref<1x32xf32, #tpu.memory_space<vmem>>, vector<1x32xf32>
    %27 = vector.broadcast %26 : vector<1x32xf32> to vector<64x32xf32>
    %28 = arith.addf %25, %27 : vector<64x32xf32>
    %cst_13 = arith.constant 0.000000e+00 : f32
    %29 = vector.broadcast %cst_13 : f32 to vector<64x32xf32>
    %30 = arith.cmpf oge, %28, %29 : vector<64x32xf32>
    %cst_14 = arith.constant 2.000000e-01 : f32
    %31 = vector.broadcast %cst_14 : f32 to vector<64x32xf32>
    %32 = arith.mulf %31, %28 : vector<64x32xf32>
    %33 = arith.select %30, %28, %32 : vector<64x32xi1>, vector<64x32xf32>
    %34 = arith.truncf %33 : vector<64x32xf32> to vector<64x32xbf16>
    %c0_15 = arith.constant 0 : index
    %c0_16 = arith.constant 0 : index
    %35 = vector.load %arg5[%c0_15, %c0_16] : memref<64x32xbf16, #tpu.memory_space<vmem>>, vector<64x32xbf16>
    tpu.vector_store %arg5[%c0_15, %c0_16], %34 {strides = array<i32>} : memref<64x32xbf16, #tpu.memory_space<vmem>>, vector<64x32xbf16>,
    return
  }
  func.func @transform_0(%arg0: i32) -> (i32, i32) {
    %c0_i32 = arith.constant 0 : i32
    %c0_i32_0 = arith.constant 0 : i32
    return %arg0, %c0_i32 : i32, i32
  }
  func.func @transform_1(%arg0: i32) -> (i32, i32) {
    %c0_i32 = arith.constant 0 : i32
    %c0_i32_0 = arith.constant 0 : i32
    %c0_i32_1 = arith.constant 0 : i32
    return %c0_i32, %c0_i32_0 : i32, i32
  }
  func.func @transform_2(%arg0: i32) -> (i32, i32) {
    %c0_i32 = arith.constant 0 : i32
    %c0_i32_0 = arith.constant 0 : i32
    %c0_i32_1 = arith.constant 0 : i32
    return %c0_i32, %c0_i32_0 : i32, i32
  }
  func.func @transform_3(%arg0: i32) -> (i32, i32) {
    %c0_i32 = arith.constant 0 : i32
    %c0_i32_0 = arith.constant 0 : i32
    %c0_i32_1 = arith.constant 0 : i32
    return %c0_i32, %c0_i32_0 : i32, i32
  }
  func.func @transform_4(%arg0: i32) -> (i32, i32) {
    %c0_i32 = arith.constant 0 : i32
    %c0_i32_0 = arith.constant 0 : i32
    return %arg0, %c0_i32 : i32, i32
  }
}

module attributes {stable_mosaic.version = 11 : i64} {
  func.func @_conv_in_lrelu_heads_kernel(%arg0: i32, %arg1: memref<16x512xbf16, #tpu.memory_space<vmem>>, %arg2: memref<512x64xbf16, #tpu.memory_space<vmem>>, %arg3: memref<1x64xf32, #tpu.memory_space<vmem>>, %arg4: memref<1x64xf32, #tpu.memory_space<vmem>>, %arg5: memref<16x64xf32, #tpu.memory_space<vmem>>, %arg6: memref<16x64xf32, #tpu.memory_space<vmem>>, %arg7: memref<16x64xf32, #tpu.memory_space<vmem>>, %arg8: memref<1x1x1xf32, #tpu.memory_space<vmem>>, %arg9: memref<1x1x1xf32, #tpu.memory_space<vmem>>) attributes {dimension_semantics = [#tpu.dimension_semantics<parallel>], iteration_bounds = array<i64: 2>, scalar_prefetch = 0 : i64, scratch_operands = 0 : i64, tpu.core_type = #tpu.core_type<tc>, window_params = [{transform_indices = @transform_0, window_bounds = array<i64: 16, 512>}, {pipeline_mode = #tpu.pipeline_mode<synchronous>, transform_indices = @transform_1, window_bounds = array<i64: 512, 64>}, {pipeline_mode = #tpu.pipeline_mode<synchronous>, transform_indices = @transform_2, window_bounds = array<i64: 1, 64>}, {pipeline_mode = #tpu.pipeline_mode<synchronous>, transform_indices = @transform_3, window_bounds = array<i64: 1, 64>}, {pipeline_mode = #tpu.pipeline_mode<synchronous>, transform_indices = @transform_4, window_bounds = array<i64: 16, 64>}, {pipeline_mode = #tpu.pipeline_mode<synchronous>, transform_indices = @transform_5, window_bounds = array<i64: 16, 64>}, {transform_indices = @transform_6, window_bounds = array<i64: 16, 64>}, {transform_indices = @transform_7, window_bounds = array<i64: 1, 1, 1>}, {transform_indices = @transform_8, window_bounds = array<i64: 1, 1, 1>}]} {
    %c0 = arith.constant 0 : index
    %c0_0 = arith.constant 0 : index
    %0 = vector.load %arg1[%c0, %c0_0] : memref<16x512xbf16, #tpu.memory_space<vmem>>, vector<16x512xbf16>
    %c0_1 = arith.constant 0 : index
    %c0_2 = arith.constant 0 : index
    %1 = vector.load %arg2[%c0_1, %c0_2] : memref<512x64xbf16, #tpu.memory_space<vmem>>, vector<512x64xbf16>
    %cst = arith.constant dense<0.000000e+00> : vector<16x64xf32>
    %2 = tpu.matmul %0, %1, %cst {dimension_numbers = #tpu.dot_dimension_numbers<[1], [0], [0], [1], [0, 0, 1, 1], [], []>} : vector<16x512xbf16>, vector<512x64xbf16>, vector<16x64xf32> -> vector<16x64xf32>
    %cst_3 = arith.constant dense<0.000000e+00> : vector<64xf32>
    %3 = vector.multi_reduction <add>, %2, %cst_3 [0] : vector<16x64xf32> to vector<64xf32>
    %4 = vector.shape_cast %3 : vector<64xf32> to vector<1x64xf32>
    %cst_4 = arith.constant 6.250000e-02 : f32
    %5 = vector.broadcast %cst_4 : f32 to vector<1x64xf32>
    %6 = arith.mulf %4, %5 : vector<1x64xf32>
    %7 = arith.mulf %2, %2 : vector<16x64xf32>
    %cst_5 = arith.constant dense<0.000000e+00> : vector<64xf32>
    %8 = vector.multi_reduction <add>, %7, %cst_5 [0] : vector<16x64xf32> to vector<64xf32>
    %9 = vector.shape_cast %8 : vector<64xf32> to vector<1x64xf32>
    %cst_6 = arith.constant 6.250000e-02 : f32
    %10 = vector.broadcast %cst_6 : f32 to vector<1x64xf32>
    %11 = arith.mulf %9, %10 : vector<1x64xf32>
    %12 = arith.mulf %6, %6 : vector<1x64xf32>
    %13 = arith.subf %11, %12 : vector<1x64xf32>
    %cst_7 = arith.constant 0.000000e+00 : f32
    %14 = vector.broadcast %cst_7 : f32 to vector<1x64xf32>
    %15 = arith.maximumf %13, %14 : vector<1x64xf32>
    %16 = vector.broadcast %6 : vector<1x64xf32> to vector<16x64xf32>
    %17 = arith.subf %2, %16 : vector<16x64xf32>
    %cst_8 = arith.constant 9.99999974E-6 : f32
    %18 = vector.broadcast %cst_8 : f32 to vector<1x64xf32>
    %19 = arith.addf %15, %18 : vector<1x64xf32>
    %20 = math.rsqrt %19 : vector<1x64xf32>
    %21 = vector.broadcast %20 : vector<1x64xf32> to vector<16x64xf32>
    %22 = arith.mulf %17, %21 : vector<16x64xf32>
    %c0_9 = arith.constant 0 : index
    %c0_10 = arith.constant 0 : index
    %23 = vector.load %arg3[%c0_9, %c0_10] : memref<1x64xf32, #tpu.memory_space<vmem>>, vector<1x64xf32>
    %24 = vector.broadcast %23 : vector<1x64xf32> to vector<16x64xf32>
    %25 = arith.mulf %22, %24 : vector<16x64xf32>
    %c0_11 = arith.constant 0 : index
    %c0_12 = arith.constant 0 : index
    %26 = vector.load %arg4[%c0_11, %c0_12] : memref<1x64xf32, #tpu.memory_space<vmem>>, vector<1x64xf32>
    %27 = vector.broadcast %26 : vector<1x64xf32> to vector<16x64xf32>
    %28 = arith.addf %25, %27 : vector<16x64xf32>
    %cst_13 = arith.constant 0.000000e+00 : f32
    %29 = vector.broadcast %cst_13 : f32 to vector<16x64xf32>
    %30 = arith.cmpf oge, %28, %29 : vector<16x64xf32>
    %cst_14 = arith.constant 2.000000e-01 : f32
    %31 = vector.broadcast %cst_14 : f32 to vector<16x64xf32>
    %32 = arith.mulf %31, %28 : vector<16x64xf32>
    %33 = arith.select %30, %28, %32 : vector<16x64xi1>, vector<16x64xf32>
    %c0_15 = arith.constant 0 : index
    %c0_16 = arith.constant 0 : index
    %34 = vector.load %arg7[%c0_15, %c0_16] : memref<16x64xf32, #tpu.memory_space<vmem>>, vector<16x64xf32>
    tpu.vector_store %arg7[%c0_15, %c0_16], %33 {strides = array<i32>} : memref<16x64xf32, #tpu.memory_space<vmem>>, vector<16x64xf32>,
    %c0_17 = arith.constant 0 : index
    %c0_18 = arith.constant 0 : index
    %35 = vector.load %arg5[%c0_17, %c0_18] : memref<16x64xf32, #tpu.memory_space<vmem>>, vector<16x64xf32>
    %36 = arith.mulf %33, %35 : vector<16x64xf32>
    %37 = vector.shape_cast %36 : vector<16x64xf32> to vector<1x16x64xf32>
    %cst_19 = arith.constant dense<0.000000e+00> : vector<1xf32>
    %38 = vector.multi_reduction <add>, %37, %cst_19 [1, 2] : vector<1x16x64xf32> to vector<1xf32>
    %39 = vector.shape_cast %38 : vector<1xf32> to vector<1x1x1xf32>
    %40 = vector.extract %39[0, 0, 0] : f32 from vector<1x1x1xf32>
    %41 = vector.broadcast %40 : f32 to vector<1x1xf32>
    %c0_20 = arith.constant 0 : index
    %c0_21 = arith.constant 0 : index
    %c0_22 = arith.constant 0 : index
    %42 = vector.load %arg8[%c0_20, %c0_21, %c0_22] : memref<1x1x1xf32, #tpu.memory_space<vmem>>, vector<1x1x1xf32>
    %43 = vector.shape_cast %42 : vector<1x1x1xf32> to vector<1x1xf32>
    %44 = vector.shape_cast %41 : vector<1x1xf32> to vector<1x1x1xf32>
    tpu.vector_store %arg8[%c0_20, %c0_21, %c0_22], %44 {strides = array<i32>} : memref<1x1x1xf32, #tpu.memory_space<vmem>>, vector<1x1x1xf32>,
    %c0_23 = arith.constant 0 : index
    %c0_24 = arith.constant 0 : index
    %45 = vector.load %arg6[%c0_23, %c0_24] : memref<16x64xf32, #tpu.memory_space<vmem>>, vector<16x64xf32>
    %46 = arith.mulf %33, %45 : vector<16x64xf32>
    %47 = vector.shape_cast %46 : vector<16x64xf32> to vector<1x16x64xf32>
    %cst_25 = arith.constant dense<0.000000e+00> : vector<1xf32>
    %48 = vector.multi_reduction <add>, %47, %cst_25 [1, 2] : vector<1x16x64xf32> to vector<1xf32>
    %49 = vector.shape_cast %48 : vector<1xf32> to vector<1x1x1xf32>
    %50 = vector.extract %49[0, 0, 0] : f32 from vector<1x1x1xf32>
    %51 = vector.broadcast %50 : f32 to vector<1x1xf32>
    %c0_26 = arith.constant 0 : index
    %c0_27 = arith.constant 0 : index
    %c0_28 = arith.constant 0 : index
    %52 = vector.load %arg9[%c0_26, %c0_27, %c0_28] : memref<1x1x1xf32, #tpu.memory_space<vmem>>, vector<1x1x1xf32>
    %53 = vector.shape_cast %52 : vector<1x1x1xf32> to vector<1x1xf32>
    %54 = vector.shape_cast %51 : vector<1x1xf32> to vector<1x1x1xf32>
    tpu.vector_store %arg9[%c0_26, %c0_27, %c0_28], %54 {strides = array<i32>} : memref<1x1x1xf32, #tpu.memory_space<vmem>>, vector<1x1x1xf32>,
    return
  }
  func.func @transform_0(%arg0: i32) -> (i32, i32) {
    %c0_i32 = arith.constant 0 : i32
    %c0_i32_0 = arith.constant 0 : i32
    return %arg0, %c0_i32 : i32, i32
  }
  func.func @transform_1(%arg0: i32) -> (i32, i32) {
    %c0_i32 = arith.constant 0 : i32
    %c0_i32_0 = arith.constant 0 : i32
    %c0_i32_1 = arith.constant 0 : i32
    return %c0_i32, %c0_i32_0 : i32, i32
  }
  func.func @transform_2(%arg0: i32) -> (i32, i32) {
    %c0_i32 = arith.constant 0 : i32
    %c0_i32_0 = arith.constant 0 : i32
    %c0_i32_1 = arith.constant 0 : i32
    return %c0_i32, %c0_i32_0 : i32, i32
  }
  func.func @transform_3(%arg0: i32) -> (i32, i32) {
    %c0_i32 = arith.constant 0 : i32
    %c0_i32_0 = arith.constant 0 : i32
    %c0_i32_1 = arith.constant 0 : i32
    return %c0_i32, %c0_i32_0 : i32, i32
  }
  func.func @transform_4(%arg0: i32) -> (i32, i32) {
    %c0_i32 = arith.constant 0 : i32
    %c0_i32_0 = arith.constant 0 : i32
    %c0_i32_1 = arith.constant 0 : i32
    return %c0_i32, %c0_i32_0 : i32, i32
  }
  func.func @transform_5(%arg0: i32) -> (i32, i32) {
    %c0_i32 = arith.constant 0 : i32
    %c0_i32_0 = arith.constant 0 : i32
    %c0_i32_1 = arith.constant 0 : i32
    return %c0_i32, %c0_i32_0 : i32, i32
  }
  func.func @transform_6(%arg0: i32) -> (i32, i32) {
    %c0_i32 = arith.constant 0 : i32
    %c0_i32_0 = arith.constant 0 : i32
    return %arg0, %c0_i32 : i32, i32
  }
  func.func @transform_7(%arg0: i32) -> (i32, i32, i32) {
    %c0_i32 = arith.constant 0 : i32
    %c0_i32_0 = arith.constant 0 : i32
    %c0_i32_1 = arith.constant 0 : i32
    return %arg0, %c0_i32, %c0_i32_0 : i32, i32, i32
  }
  func.func @transform_8(%arg0: i32) -> (i32, i32, i32) {
    %c0_i32 = arith.constant 0 : i32
    %c0_i32_0 = arith.constant 0 : i32
    %c0_i32_1 = arith.constant 0 : i32
    return %arg0, %c0_i32, %c0_i32_0 : i32, i32, i32
  }
}

</mosaic_0001>

<llo_original>
// kernel: discriminator_forward.3
$region0: #{discriminator_forward.3}
  #allocation0 [shape = 'u32[]', space=smem, size = 0x4, offset = 0x4, fixed_abs, tag = 'smem constant byte address 0x4 - core index']
  #allocation1 [shape = 'u32[144,128]{1,0:T(1,128)}', space=vmem, size = 0x12000, scoped, tag = 'internal scratch']
  %s0 = inlined_call_operand.vmem [shape: bf16[512,48], index: 0, kind: input, shape index: {}]
  %s1 = inlined_call_operand.vmem [shape: bf16[48,16], index: 1, kind: input, shape index: {}]
  %s2 = inlined_call_operand.vmem [shape: f32[1,16], index: 2, kind: input, shape index: {}]
  %s3 = inlined_call_operand.vmem [shape: bf16[512,16], index: 3, kind: output, shape index: {}]
  %s4 = sld [smem:[#allocation0]]
  $region45: #{discriminator_forward.3} parent=0
    _
  %s6 = ssub.s32 1, %s4
  %s7 = scalar_select 0, %s6, %s4
  loop: start=0, step=1, limit=4
  $region2: #{discriminator_forward.3} parent=0 // loop_pre_header
    _
  $region3: #{discriminator_forward.3} parent=0 // loop_header
    %s9 = sphi 0, %s13
    %p10 = scmp.ge.s32.totalorder %s9, 4
    %s19 = sphi 0, %s21
    %s22 = sphi 0, %s19
    %s23 = sphi 0, %s22
    %s39 = sphi 0, %s23
    %s43 = sphi 0, %s43
    %s45 = sphi 0, %s43
    %s46 = sphi 0, %s45
    %s60 = sphi 0, %s46
    %s64 = sphi 0, %s64
    %s66 = sphi 0, %s64
    %s67 = sphi 0, %s66
    %s81 = sphi 0, %s67
    %s87 = sphi 0, %s89
    %s90 = sphi 0, %s87
    %s91 = sphi 0, %s90
    %s107 = sphi 0, %s91
  $region4: #{discriminator_forward.3} parent=0 // loop_header_branch
    %12 = sbr.rel (%p10) target = $region8
  $region5: #{discriminator_forward.3} parent=0 // loop_body
    %s14 = ssub.s32 %s9, 1
    %s15 = ssub.s32 %s9, 2
    %s16 = sadd.s32 %s9, 1
    %s17 = ssub.s32 %s9, %s16
    %p18 = scmp.eq.s32.totalorder %s17, 0
    %s20 = sadd.s32 %s19, 1
    %s21 = scalar_select %p18, %s19, %s20
    %p24 = pneg %p18
    %p25 = scmp.eq.s32.totalorder %s9, 1
    %p26 = por %p24, %p25
    %p27 = scmp.ne.s32.totalorder %s19, %s22
    %p28 = scmp.eq.s32.totalorder %s9, 0
    %p29 = por %p27, %p28
    %p30 = scmp.ne.s32.totalorder %s19, %s22
    %p31 = scmp.eq.s32.totalorder %s14, 1
    %p32 = por %p30, %p31
    %p33 = scmp.ne.s32.totalorder %s22, %s23
    %p34 = scmp.eq.s32.totalorder %s14, 0
    %p35 = por %p33, %p34
    %p36 = scmp.ne.s32.totalorder %s22, %s23
    %p37 = scmp.eq.s32.totalorder %s15, 1
    %p38 = por %p36, %p37
    %p40 = scmp.ne.s32.totalorder %s23, %s39
    %p41 = scmp.eq.s32.totalorder %s15, 0
    %p42 = por %p40, %p41
    %s44 = sadd.s32 %s43, 1
    %p47 = scmp.eq.s32.totalorder %s9, 1
    %p48 = scmp.ne.s32.totalorder %s43, %s45
    %p49 = scmp.eq.s32.totalorder %s9, 0
    %p50 = por %p48, %p49
    %p51 = scmp.ne.s32.totalorder %s43, %s45
    %p52 = scmp.eq.s32.totalorder %s14, 1
    %p53 = por %p51, %p52
    %p54 = scmp.ne.s32.totalorder %s45, %s46
    %p55 = scmp.eq.s32.totalorder %s14, 0
    %p56 = por %p54, %p55
    %p57 = scmp.ne.s32.totalorder %s45, %s46
    %p58 = scmp.eq.s32.totalorder %s15, 1
    %p59 = por %p57, %p58
    %p61 = scmp.ne.s32.totalorder %s46, %s60
    %p62 = scmp.eq.s32.totalorder %s15, 0
    %p63 = por %p61, %p62
    %s65 = sadd.s32 %s64, 1
    %p68 = scmp.eq.s32.totalorder %s9, 1
    %p69 = scmp.ne.s32.totalorder %s64, %s66
    %p70 = scmp.eq.s32.totalorder %s9, 0
    %p71 = por %p69, %p70
    %p72 = scmp.ne.s32.totalorder %s64, %s66
    %p73 = scmp.eq.s32.totalorder %s14, 1
    %p74 = por %p72, %p73
    %p75 = scmp.ne.s32.totalorder %s66, %s67
    %p76 = scmp.eq.s32.totalorder %s14, 0
    %p77 = por %p75, %p76
    %p78 = scmp.ne.s32.totalorder %s66, %s67
    %p79 = scmp.eq.s32.totalorder %s15, 1
    %p80 = por %p78, %p79
    %p82 = scmp.ne.s32.totalorder %s67, %s81
    %p83 = scmp.eq.s32.totalorder %s15, 0
    %p84 = por %p82, %p83
    %s85 = ssub.s32 %s9, %s16
    %p86 = scmp.eq.s32.totalorder %s85, 0
    %s88 = sadd.s32 %s87, 1
    %s89 = scalar_select %p86, %s87, %s88
    %p92 = pneg %p86
    %p93 = scmp.eq.s32.totalorder %s9, 1
    %p94 = por %p92, %p93
    %p95 = scmp.ne.s32.totalorder %s87, %s90
    %p96 = scmp.eq.s32.totalorder %s9, 0
    %p97 = por %p95, %p96
    %p98 = scmp.ne.s32.totalorder %s87, %s90
    %p99 = scmp.eq.s32.totalorder %s14, 1
    %p100 = por %p98, %p99
    %p101 = scmp.ne.s32.totalorder %s90, %s91
    %p102 = scmp.eq.s32.totalorder %s14, 0
    %p103 = por %p101, %p102
    %p104 = scmp.ne.s32.totalorder %s90, %s91
    %p105 = scmp.eq.s32.totalorder %s15, 1
    %p106 = por %p104, %p105
    %p108 = scmp.ne.s32.totalorder %s91, %s107
    %p109 = scmp.eq.s32.totalorder %s15, 0
    %p110 = por %p108, %p109
    %p111 = scmp.le.s32.totalorder 1, %s9
    %p112 = scmp.lt.s32.totalorder %s9, 3
    %p113 = pnand %p111, %p112
    %p114 = pneg %p113
    // Predicated region
    $region9: #{discriminator_forward.3} parent=5 // pred_check
      _
    $region10: #{discriminator_forward.3} parent=5 // pred_check_branch
      %116 = sbr.rel (%p113) target = $region12
    $region11: #{discriminator_forward.3} parent=5 // pred_region
      %s117 = ssub.s32 %s9, 1
      // Predicated region
      $region13: #{discriminator_forward.3} parent=11 // pred_check
        %p118 = pneg %p56
      $region14: #{discriminator_forward.3} parent=11 // pred_check_branch
        %120 = sbr.rel (%p118) target = $region16
      $region15: #{discriminator_forward.3} parent=11 // pred_region
        _
      $region16: #{discriminator_forward.3} parent=11 // pred_fallthru
        _
      // Predicated region
      $region17: #{discriminator_forward.3} parent=11 // pred_check
        %p121 = pneg %p77
      $region18: #{discriminator_forward.3} parent=11 // pred_check_branch
        %123 = sbr.rel (%p121) target = $region20
      $region19: #{discriminator_forward.3} parent=11 // pred_region
        _
      $region20: #{discriminator_forward.3} parent=11 // pred_fallthru
        _
    $region12: #{discriminator_forward.3} parent=5 // pred_fallthru
      _
    %p124 = scmp.lt.s32.totalorder %s9, 2
    // Predicated region
    $region21: #{discriminator_forward.3} parent=5 // pred_check
      %p125 = pneg %p124
    $region22: #{discriminator_forward.3} parent=5 // pred_check_branch
      %127 = sbr.rel (%p125) target = $region24
    $region23: #{discriminator_forward.3} parent=5 // pred_region
      // Predicated region
      $region25: #{discriminator_forward.3} parent=23 // pred_check
        %p128 = pneg %p29
      $region26: #{discriminator_forward.3} parent=23 // pred_check_branch
        %130 = sbr.rel (%p128) target = $region28
      $region27: #{discriminator_forward.3} parent=23 // pred_region
        %s131 = smul.u32 32, %s9
        %p132 = scmp.lt.s32.totalorder %s131, 63
        %s133 = scalar_select %p132, %s131, 63
        %s134 = smul.addr %s133, 4
        %s135 = scalar_lea.vmem %s0, %s134
        %s136 = smul.u32 32, %s9
      $region28: #{discriminator_forward.3} parent=23 // pred_fallthru
        _
    $region24: #{discriminator_forward.3} parent=5 // pred_fallthru
      _
    %p137 = scmp.le.s32.totalorder 1, %s9
    %p138 = scmp.lt.s32.totalorder %s9, 3
    %p139 = pnand %p137, %p138
    %p140 = pneg %p139
    // Predicated region
    $region29: #{discriminator_forward.3} parent=5 // pred_check
      _
    $region30: #{discriminator_forward.3} parent=5 // pred_check_branch
      %142 = sbr.rel (%p139) target = $region32
    $region31: #{discriminator_forward.3} parent=5 // pred_region
      %s143 = ssub.s32 %s9, 1
      %s144 = smul.u32 32, %s14
      %p145 = scmp.lt.s32.totalorder %s144, 63
      %s146 = scalar_select %p145, %s144, 63
      %s147 = smul.addr %s146, 4
      %s148 = scalar_lea.vmem %s0, %s147
      %p149 = pneg %p35
      %p150 = pneg %p32
      %p151 = pneg %p56
      %p152 = pneg %p53
      %p153 = pneg %p77
      %p154 = pneg %p74
      %p155 = pneg %p103
      %p156 = pneg %p100
      %s157 = smul.u32 32, %s14
      %p158 = scmp.lt.s32.totalorder %s157, 63
      %s159 = scalar_select %p158, %s157, 63
      %s160 = smul.addr %s159, 4
      %s161 = scalar_lea.vmem %s3, %s160
      %s162 = smul.u32 32, %s14
      %p163 = scmp.lt.s32.totalorder %s162, 63
      %s164 = scalar_select %p163, %s162, 63
      %s165 = smul.addr %s164, 4
      %s166 = scalar_lea.vmem %s0, %s165
      %s167 = smul.u32 32, %s14
      %s168 = smul.u32 32, %s14
      %p169 = scmp.lt.s32.totalorder %s168, 63
      %s170 = scalar_select %p169, %s168, 63
      %s171 = smul.addr %s170, 4
      %s172 = scalar_lea.vmem %s3, %s171
      %s173 = smul.u32 32, %s14
      %v175 = vld [vmem:[%s166] sm:$0xf]
      %v176 = vld [vmem:[%s166 + $0x4] sm:$0xf]
      %v177 = vld [vmem:[%s166 + $0x8] sm:$0xf]
      %v178 = vld [vmem:[%s166 + $0xc] sm:$0xf]
      %v179 = vld [vmem:[%s166 + $0x10] sm:$0xf]
      %v180 = vld [vmem:[%s166 + $0x14] sm:$0xf]
      %v181 = vld [vmem:[%s166 + $0x18] sm:$0xf]
      %v182 = vld [vmem:[%s166 + $0x1c] sm:$0xf]
      %v183 = vld [vmem:[%s166 + $0x20] sm:$0xf]
      %v184 = vld [vmem:[%s166 + $0x24] sm:$0xf]
      %v185 = vld [vmem:[%s166 + $0x28] sm:$0xf]
      %v186 = vld [vmem:[%s166 + $0x2c] sm:$0xf]
      %v187 = vld [vmem:[%s166 + $0x30] sm:$0xf]
      %v188 = vld [vmem:[%s166 + $0x34] sm:$0xf]
      %v189 = vld [vmem:[%s166 + $0x38] sm:$0xf]
      %v190 = vld [vmem:[%s166 + $0x3c] sm:$0xf]
      %v191 = vld [vmem:[%s166 + $0x40] sm:$0xf]
      %v192 = vld [vmem:[%s166 + $0x44] sm:$0xf]
      %v193 = vld [vmem:[%s166 + $0x48] sm:$0xf]
      %v194 = vld [vmem:[%s166 + $0x4c] sm:$0xf]
      %v195 = vld [vmem:[%s166 + $0x50] sm:$0xf]
      %v196 = vld [vmem:[%s166 + $0x54] sm:$0xf]
      %v197 = vld [vmem:[%s166 + $0x58] sm:$0xf]
      %v198 = vld [vmem:[%s166 + $0x5c] sm:$0xf]
      %v199 = vld [vmem:[%s166 + $0x60] sm:$0xf]
      %v200 = vld [vmem:[%s166 + $0x64] sm:$0xf]
      %v201 = vld [vmem:[%s166 + $0x68] sm:$0xf]
      %v202 = vld [vmem:[%s166 + $0x6c] sm:$0xf]
      %v203 = vld [vmem:[%s166 + $0x70] sm:$0xf]
      %v204 = vld [vmem:[%s166 + $0x74] sm:$0xf]
      %v205 = vld [vmem:[%s166 + $0x78] sm:$0xf]
      %v206 = vld [vmem:[%s166 + $0x7c] sm:$0xf]
      %v207 = vld [vmem:[%s1] sm:$0xf]
      %v208 = vld [vmem:[%s1 + $0x4] sm:$0xf]
      %v209 = vld [vmem:[%s1 + $0x8] sm:$0xf]
      %v210 = vld [vmem:[%s1 + $0xc] sm:$0xf]
      %v211 = vld [vmem:[%s1 + $0x10] sm:$0xf]
      %v212 = vld [vmem:[%s1 + $0x14] sm:$0xf]
      %v213 = vld [vmem:[%s2] sm:$0x1]
      %v215 = vlaneseq
      %v216 = vshrl.u32 %v215, 7
      %v217 = vsub.s32 0, %v216
      %v218 = vrot.slane %v213, %v217
      %v252 = vunpack.c.l.b16 %v175
      %v253 = vunpack.c.l.b16 %v176
      %v254 = vunpack.c.l.b16 %v177
      %v255 = vunpack.c.l.b16 %v178
      %v256 = vunpack.c.l.b16 %v179
      %v257 = vunpack.c.l.b16 %v180
      %v258 = vunpack.c.l.b16 %v181
      %v259 = vunpack.c.l.b16 %v182
      %v260 = vunpack.c.l.b16 %v183
      %v261 = vunpack.c.l.b16 %v184
      %v262 = vunpack.c.l.b16 %v185
      %v263 = vunpack.c.l.b16 %v186
      %v264 = vunpack.c.l.b16 %v187
      %v265 = vunpack.c.l.b16 %v188
      %v266 = vunpack.c.l.b16 %v189
      %v267 = vunpack.c.l.b16 %v190
      %v268 = vunpack.c.l.b16 %v191
      %v269 = vunpack.c.l.b16 %v192
      %v270 = vunpack.c.l.b16 %v193
      %v271 = vunpack.c.l.b16 %v194
      %v272 = vunpack.c.l.b16 %v195
      %v273 = vunpack.c.l.b16 %v196
      %v274 = vunpack.c.l.b16 %v197
      %v275 = vunpack.c.l.b16 %v198
      %v276 = vunpack.c.l.b16 %v199
      %v277 = vunpack.c.l.b16 %v200
      %v278 = vunpack.c.l.b16 %v201
      %v279 = vunpack.c.l.b16 %v202
      %v280 = vunpack.c.l.b16 %v203
      %v281 = vunpack.c.l.b16 %v204
      %v282 = vunpack.c.l.b16 %v205
      %v283 = vunpack.c.l.b16 %v206
      %v284 = vpack.c.b16 %v253, %v252
      %v285 = vpack.c.b16 %v255, %v254
      %v286 = vpack.c.b16 %v257, %v256
      %v287 = vpack.c.b16 %v259, %v258
      %v288 = vpack.c.b16 %v261, %v260
      %v289 = vpack.c.b16 %v263, %v262
      %v290 = vpack.c.b16 %v265, %v264
      %v291 = vpack.c.b16 %v267, %v266
      %v292 = vpack.c.b16 %v269, %v268
      %v293 = vpack.c.b16 %v271, %v270
      %v294 = vpack.c.b16 %v273, %v272
      %v295 = vpack.c.b16 %v275, %v274
      %v296 = vpack.c.b16 %v277, %v276
      %v297 = vpack.c.b16 %v279, %v278
      %v298 = vpack.c.b16 %v281, %v280
      %v299 = vpack.c.b16 %v283, %v282
      %v306 = vunpack.c.l.b16 %v207
      %v307 = vunpack.c.l.b16 %v208
      %v308 = vunpack.c.l.b16 %v209
      %v309 = vunpack.c.l.b16 %v210
      %v310 = vunpack.c.l.b16 %v211
      %v311 = vunpack.c.l.b16 %v212
      %v312 = vpack.c.b16 %v307, %v306
      %v313 = vpack.c.b16 %v309, %v308
      %v314 = vpack.c.b16 %v311, %v310
      %vm318 = vcmask 392192
      %v320 = vsel %vm318, %v284, 0
      %v323 = vsel %vm318, %v285, 0
      %v326 = vsel %vm318, %v286, 0
      %v329 = vsel %vm318, %v287, 0
      %v332 = vsel %vm318, %v288, 0
      %v335 = vsel %vm318, %v289, 0
      %v338 = vsel %vm318, %v290, 0
      %v341 = vsel %vm318, %v291, 0
      %v344 = vsel %vm318, %v292, 0
      %v347 = vsel %vm318, %v293, 0
      %v350 = vsel %vm318, %v294, 0
      %v353 = vsel %vm318, %v295, 0
      %v356 = vsel %vm318, %v296, 0
      %v359 = vsel %vm318, %v297, 0
      %v362 = vsel %vm318, %v298, 0
      %v365 = vsel %vm318, %v299, 0
      %367 = vmatprep.subr.bf16.mxu0 0
      %368 = vmatpush1.bf16.msra.mxu0 0
      %369 = vmatprep.subr.bf16.mxu0 0
      %370 = vmatpush1.bf16.msra.mxu0 0
      %371 = vmatprep.subr.bf16.mxu0 0
      %372 = vmatpush1.bf16.msra.mxu0 0
      %373 = vmatprep.subr.bf16.mxu0 0
      %374 = vmatpush1.bf16.msra.mxu0 0
      %375 = vmatprep.subr.bf16.mxu0 0
      %376 = vmatpush1.bf16.msra.mxu0 0
      %377 = vmatprep.subr.bf16.mxu0 0
      %378 = vmatpush1.bf16.msra.mxu0 %v314
      %379 = vmatprep.subr.bf16.mxu0 0
      %380 = vmatpush1.bf16.msra.mxu0 %v313
      %381 = vmatprep.subr.bf16.mxu0 0
      %382 = vmatpush1.bf16.msra.mxu0 %v312
      %383 = vmatprep.subr.bf16.mxu0 0
      %384 = vmatpush2.bf16.msra.mxu0 0
      %385 = vmatprep.subr.bf16.mxu0 0
      %386 = vmatpush2.bf16.msra.mxu0 0
      %387 = vmatprep.subr.bf16.mxu0 0
      %388 = vmatpush2.bf16.msra.mxu0 0
      %389 = vmatprep.subr.bf16.mxu0 0
      %390 = vmatpush2.bf16.msra.mxu0 0
      %391 = vmatprep.subr.bf16.mxu0 0
      %392 = vmatpush2.bf16.msra.mxu0 0
      %393 = vmatprep.subr.bf16.mxu0 0
      %394 = vmatpush2.bf16.msra.mxu0 0
      %395 = vmatprep.subr.bf16.mxu0 0
      %396 = vmatpush2.bf16.msra.mxu0 0
      %397 = vmatprep.subr.bf16.mxu0 0
      %398 = vmatpush2.bf16.msra.mxu0 0
      %399 = vmatprep.mubr.bf16.mxu0 0
      %400 = vmatmul.mubr.bf16.gmra.mxu0 %v320
      %v401 = vpop.f32.mrf.mxu0
      %v402 = vadd.f32 %v218, %v401
      %v403 = vpop.f32.mrf.mxu0
      %v404 = vpop.f32.mrf.mxu0
      %v405 = vadd.f32 %v218, %v404
      %v406 = vpop.f32.mrf.mxu0
      %407 = vmatprep.mubr.bf16.mxu0 0
      %408 = vmatmul.mubr.bf16.gmra.mxu0 %v323
      %v409 = vpop.f32.mrf.mxu0
      %v410 = vadd.f32 %v218, %v409
      %v411 = vpop.f32.mrf.mxu0
      %v412 = vpop.f32.mrf.mxu0
      %v413 = vadd.f32 %v218, %v412
      %v414 = vpop.f32.mrf.mxu0
      %415 = vmatprep.mubr.bf16.mxu0 0
      %416 = vmatmul.mubr.bf16.gmra.mxu0 %v326
      %v417 = vpop.f32.mrf.mxu0
      %v418 = vadd.f32 %v218, %v417
      %v419 = vpop.f32.mrf.mxu0
      %v420 = vpop.f32.mrf.mxu0
      %v421 = vadd.f32 %v218, %v420
      %v422 = vpop.f32.mrf.mxu0
      %423 = vmatprep.mubr.bf16.mxu0 0
      %424 = vmatmul.mubr.bf16.gmra.mxu0 %v329
      %v425 = vpop.f32.mrf.mxu0
      %v426 = vadd.f32 %v218, %v425
      %v427 = vpop.f32.mrf.mxu0
      %v428 = vpop.f32.mrf.mxu0
      %v429 = vadd.f32 %v218, %v428
      %v430 = vpop.f32.mrf.mxu0
      %431 = vmatprep.mubr.bf16.mxu0 0
      %432 = vmatmul.mubr.bf16.gmra.mxu0 %v332
      %v433 = vpop.f32.mrf.mxu0
      %v434 = vadd.f32 %v218, %v433
      %v435 = vpop.f32.mrf.mxu0
      %v436 = vpop.f32.mrf.mxu0
      %v437 = vadd.f32 %v218, %v436
      %v438 = vpop.f32.mrf.mxu0
      %439 = vmatprep.mubr.bf16.mxu0 0
      %440 = vmatmul.mubr.bf16.gmra.mxu0 %v335
      %v441 = vpop.f32.mrf.mxu0
      %v442 = vadd.f32 %v218, %v441
      %v443 = vpop.f32.mrf.mxu0
      %v444 = vpop.f32.mrf.mxu0
      %v445 = vadd.f32 %v218, %v444
      %v446 = vpop.f32.mrf.mxu0
      %447 = vmatprep.mubr.bf16.mxu0 0
      %448 = vmatmul.mubr.bf16.gmra.mxu0 %v338
      %v449 = vpop.f32.mrf.mxu0
      %v450 = vadd.f32 %v218, %v449
      %v451 = vpop.f32.mrf.mxu0
      %v452 = vpop.f32.mrf.mxu0
      %v453 = vadd.f32 %v218, %v452
      %v454 = vpop.f32.mrf.mxu0
      %455 = vmatprep.mubr.bf16.mxu0 0
      %456 = vmatmul.mubr.bf16.gmra.mxu0 %v341
      %v457 = vpop.f32.mrf.mxu0
      %v458 = vadd.f32 %v218, %v457
      %v459 = vpop.f32.mrf.mxu0
      %v460 = vpop.f32.mrf.mxu0
      %v461 = vadd.f32 %v218, %v460
      %v462 = vpop.f32.mrf.mxu0
      %463 = vmatprep.mubr.bf16.mxu0 0
      %464 = vmatmul.mubr.bf16.gmra.mxu0 %v344
      %v465 = vpop.f32.mrf.mxu0
      %v466 = vadd.f32 %v218, %v465
      %v467 = vpop.f32.mrf.mxu0
      %v468 = vpop.f32.mrf.mxu0
      %v469 = vadd.f32 %v218, %v468
      %v470 = vpop.f32.mrf.mxu0
      %471 = vmatprep.mubr.bf16.mxu0 0
      %472 = vmatmul.mubr.bf16.gmra.mxu0 %v347
      %v473 = vpop.f32.mrf.mxu0
      %v474 = vadd.f32 %v218, %v473
      %v475 = vpop.f32.mrf.mxu0
      %v476 = vpop.f32.mrf.mxu0
      %v477 = vadd.f32 %v218, %v476
      %v478 = vpop.f32.mrf.mxu0
      %479 = vmatprep.mubr.bf16.mxu0 0
      %480 = vmatmul.mubr.bf16.gmra.mxu0 %v350
      %v481 = vpop.f32.mrf.mxu0
      %v482 = vadd.f32 %v218, %v481
      %v483 = vpop.f32.mrf.mxu0
      %v484 = vpop.f32.mrf.mxu0
      %v485 = vadd.f32 %v218, %v484
      %v486 = vpop.f32.mrf.mxu0
      %487 = vmatprep.mubr.bf16.mxu0 0
      %488 = vmatmul.mubr.bf16.gmra.mxu0 %v353
      %v489 = vpop.f32.mrf.mxu0
      %v490 = vadd.f32 %v218, %v489
      %v491 = vpop.f32.mrf.mxu0
      %v492 = vpop.f32.mrf.mxu0
      %v493 = vadd.f32 %v218, %v492
      %v494 = vpop.f32.mrf.mxu0
      %495 = vmatprep.mubr.bf16.mxu0 0
      %496 = vmatmul.mubr.bf16.gmra.mxu0 %v356
      %v497 = vpop.f32.mrf.mxu0
      %v498 = vadd.f32 %v218, %v497
      %v499 = vpop.f32.mrf.mxu0
      %v500 = vpop.f32.mrf.mxu0
      %v501 = vadd.f32 %v218, %v500
      %v502 = vpop.f32.mrf.mxu0
      %503 = vmatprep.mubr.bf16.mxu0 0
      %504 = vmatmul.mubr.bf16.gmra.mxu0 %v359
      %v505 = vpop.f32.mrf.mxu0
      %v506 = vadd.f32 %v218, %v505
      %v507 = vpop.f32.mrf.mxu0
      %v508 = vpop.f32.mrf.mxu0
      %v509 = vadd.f32 %v218, %v508
      %v510 = vpop.f32.mrf.mxu0
      %511 = vmatprep.mubr.bf16.mxu0 0
      %512 = vmatmul.mubr.bf16.gmra.mxu0 %v362
      %v513 = vpop.f32.mrf.mxu0
      %v514 = vadd.f32 %v218, %v513
      %v515 = vpop.f32.mrf.mxu0
      %v516 = vpop.f32.mrf.mxu0
      %v517 = vadd.f32 %v218, %v516
      %v518 = vpop.f32.mrf.mxu0
      %519 = vmatprep.mubr.bf16.mxu0 0
      %520 = vmatmul.mubr.bf16.gmra.mxu0 %v365
      %v521 = vpop.f32.mrf.mxu0
      %v522 = vadd.f32 %v218, %v521
      %v523 = vpop.f32.mrf.mxu0
      %v524 = vpop.f32.mrf.mxu0
      %v525 = vadd.f32 %v218, %v524
      %v526 = vpop.f32.mrf.mxu0
      %527 = vdwg.mxu0
      %vm528 = vcmp.ge.f32.partialorder %v402, 0.0
      %vm529 = vcmp.ge.f32.partialorder %v405, 0.0
      %vm530 = vcmp.ge.f32.partialorder %v410, 0.0
      %vm531 = vcmp.ge.f32.partialorder %v413, 0.0
      %vm532 = vcmp.ge.f32.partialorder %v418, 0.0
      %vm533 = vcmp.ge.f32.partialorder %v421, 0.0
      %vm534 = vcmp.ge.f32.partialorder %v426, 0.0
      %vm535 = vcmp.ge.f32.partialorder %v429, 0.0
      %vm536 = vcmp.ge.f32.partialorder %v434, 0.0
      %vm537 = vcmp.ge.f32.partialorder %v437, 0.0
      %vm538 = vcmp.ge.f32.partialorder %v442, 0.0
      %vm539 = vcmp.ge.f32.partialorder %v445, 0.0
      %vm540 = vcmp.ge.f32.partialorder %v450, 0.0
      %vm541 = vcmp.ge.f32.partialorder %v453, 0.0
      %vm542 = vcmp.ge.f32.partialorder %v458, 0.0
      %vm543 = vcmp.ge.f32.partialorder %v461, 0.0
      %vm544 = vcmp.ge.f32.partialorder %v466, 0.0
      %vm545 = vcmp.ge.f32.partialorder %v469, 0.0
      %vm546 = vcmp.ge.f32.partialorder %v474, 0.0
      %vm547 = vcmp.ge.f32.partialorder %v477, 0.0
      %vm548 = vcmp.ge.f32.partialorder %v482, 0.0
      %vm549 = vcmp.ge.f32.partialorder %v485, 0.0
      %vm550 = vcmp.ge.f32.partialorder %v490, 0.0
      %vm551 = vcmp.ge.f32.partialorder %v493, 0.0
      %vm552 = vcmp.ge.f32.partialorder %v498, 0.0
      %vm553 = vcmp.ge.f32.partialorder %v501, 0.0
      %vm554 = vcmp.ge.f32.partialorder %v506, 0.0
      %vm555 = vcmp.ge.f32.partialorder %v509, 0.0
      %vm556 = vcmp.ge.f32.partialorder %v514, 0.0
      %vm557 = vcmp.ge.f32.partialorder %v517, 0.0
      %vm558 = vcmp.ge.f32.partialorder %v522, 0.0
      %vm559 = vcmp.ge.f32.partialorder %v525, 0.0
      %v560 = vmul.f32 %v402, 0.2
      %v561 = vmul.f32 %v405, 0.2
      %v562 = vmul.f32 %v410, 0.2
      %v563 = vmul.f32 %v413, 0.2
      %v564 = vmul.f32 %v418, 0.2
      %v565 = vmul.f32 %v421, 0.2
      %v566 = vmul.f32 %v426, 0.2
      %v567 = vmul.f32 %v429, 0.2
      %v568 = vmul.f32 %v434, 0.2
      %v569 = vmul.f32 %v437, 0.2
      %v570 = vmul.f32 %v442, 0.2
      %v571 = vmul.f32 %v445, 0.2
      %v572 = vmul.f32 %v450, 0.2
      %v573 = vmul.f32 %v453, 0.2
      %v574 = vmul.f32 %v458, 0.2
      %v575 = vmul.f32 %v461, 0.2
      %v576 = vmul.f32 %v466, 0.2
      %v577 = vmul.f32 %v469, 0.2
      %v578 = vmul.f32 %v474, 0.2
      %v579 = vmul.f32 %v477, 0.2
      %v580 = vmul.f32 %v482, 0.2
      %v581 = vmul.f32 %v485, 0.2
      %v582 = vmul.f32 %v490, 0.2
      %v583 = vmul.f32 %v493, 0.2
      %v584 = vmul.f32 %v498, 0.2
      %v585 = vmul.f32 %v501, 0.2
      %v586 = vmul.f32 %v506, 0.2
      %v587 = vmul.f32 %v509, 0.2
      %v588 = vmul.f32 %v514, 0.2
      %v589 = vmul.f32 %v517, 0.2
      %v590 = vmul.f32 %v522, 0.2
      %v591 = vmul.f32 %v525, 0.2
      %v592 = vsel %vm528, %v402, %v560
      %v593 = vsel %vm529, %v405, %v561
      %v594 = vsel %vm530, %v410, %v562
      %v595 = vsel %vm531, %v413, %v563
      %v596 = vsel %vm532, %v418, %v564
      %v597 = vsel %vm533, %v421, %v565
      %v598 = vsel %vm534, %v426, %v566
      %v599 = vsel %vm535, %v429, %v567
      %v600 = vsel %vm536, %v434, %v568
      %v601 = vsel %vm537, %v437, %v569
      %v602 = vsel %vm538, %v442, %v570
      %v603 = vsel %vm539, %v445, %v571
      %v604 = vsel %vm540, %v450, %v572
      %v605 = vsel %vm541, %v453, %v573
      %v606 = vsel %vm542, %v458, %v574
      %v607 = vsel %vm543, %v461, %v575
      %v608 = vsel %vm544, %v466, %v576
      %v609 = vsel %vm545, %v469, %v577
      %v610 = vsel %vm546, %v474, %v578
      %v611 = vsel %vm547, %v477, %v579
      %v612 = vsel %vm548, %v482, %v580
      %v613 = vsel %vm549, %v485, %v581
      %v614 = vsel %vm550, %v490, %v582
      %v615 = vsel %vm551, %v493, %v583
      %v616 = vsel %vm552, %v498, %v584
      %v617 = vsel %vm553, %v501, %v585
      %v618 = vsel %vm554, %v506, %v586
      %v619 = vsel %vm555, %v509, %v587
      %v620 = vsel %vm556, %v514, %v588
      %v621 = vsel %vm557, %v517, %v589
      %v622 = vsel %vm558, %v522, %v590
      %v623 = vsel %vm559, %v525, %v591
      %v624 = vpack.c.bf16 %v593, %v592
      %v625 = vpack.c.bf16 %v595, %v594
      %v626 = vpack.c.bf16 %v597, %v596
      %v627 = vpack.c.bf16 %v599, %v598
      %v628 = vpack.c.bf16 %v601, %v600
      %v629 = vpack.c.bf16 %v603, %v602
      %v630 = vpack.c.bf16 %v605, %v604
      %v631 = vpack.c.bf16 %v607, %v606
      %v632 = vpack.c.bf16 %v609, %v608
      %v633 = vpack.c.bf16 %v611, %v610
      %v634 = vpack.c.bf16 %v613, %v612
      %v635 = vpack.c.bf16 %v615, %v614
      %v636 = vpack.c.bf16 %v617, %v616
      %v637 = vpack.c.bf16 %v619, %v618
      %v638 = vpack.c.bf16 %v621, %v620
      %v639 = vpack.c.bf16 %v623, %v622
      %v656 = vunpack.c.l.b16 %v624
      %v657 = vunpack.c.h.b16 %v624
      %v658 = vunpack.c.l.b16 %v625
      %v659 = vunpack.c.h.b16 %v625
      %v660 = vunpack.c.l.b16 %v626
      %v661 = vunpack.c.h.b16 %v626
      %v662 = vunpack.c.l.b16 %v627
      %v663 = vunpack.c.h.b16 %v627
      %v664 = vunpack.c.l.b16 %v628
      %v665 = vunpack.c.h.b16 %v628
      %v666 = vunpack.c.l.b16 %v629
      %v667 = vunpack.c.h.b16 %v629
      %v668 = vunpack.c.l.b16 %v630
      %v669 = vunpack.c.h.b16 %v630
      %v670 = vunpack.c.l.b16 %v631
      %v671 = vunpack.c.h.b16 %v631
      %v672 = vunpack.c.l.b16 %v632
      %v673 = vunpack.c.h.b16 %v632
      %v674 = vunpack.c.l.b16 %v633
      %v675 = vunpack.c.h.b16 %v633
      %v676 = vunpack.c.l.b16 %v634
      %v677 = vunpack.c.h.b16 %v634
      %v678 = vunpack.c.l.b16 %v635
      %v679 = vunpack.c.h.b16 %v635
      %v680 = vunpack.c.l.b16 %v636
      %v681 = vunpack.c.h.b16 %v636
      %v682 = vunpack.c.l.b16 %v637
      %v683 = vunpack.c.h.b16 %v637
      %v684 = vunpack.c.l.b16 %v638
      %v685 = vunpack.c.h.b16 %v638
      %v686 = vunpack.c.l.b16 %v639
      %v687 = vunpack.c.h.b16 %v639
      %v688 = vpack.c.b16 %v656, %v656
      %v689 = vpack.c.b16 %v657, %v657
      %v690 = vpack.c.b16 %v658, %v658
      %v691 = vpack.c.b16 %v659, %v659
      %v692 = vpack.c.b16 %v660, %v660
      %v693 = vpack.c.b16 %v661, %v661
      %v694 = vpack.c.b16 %v662, %v662
      %v695 = vpack.c.b16 %v663, %v663
      %v696 = vpack.c.b16 %v664, %v664
      %v697 = vpack.c.b16 %v665, %v665
      %v698 = vpack.c.b16 %v666, %v666
      %v699 = vpack.c.b16 %v667, %v667
      %v700 = vpack.c.b16 %v668, %v668
      %v701 = vpack.c.b16 %v669, %v669
      %v702 = vpack.c.b16 %v670, %v670
      %v703 = vpack.c.b16 %v671, %v671
      %v704 = vpack.c.b16 %v672, %v672
      %v705 = vpack.c.b16 %v673, %v673
      %v706 = vpack.c.b16 %v674, %v674
      %v707 = vpack.c.b16 %v675, %v675
      %v708 = vpack.c.b16 %v676, %v676
      %v709 = vpack.c.b16 %v677, %v677
      %v710 = vpack.c.b16 %v678, %v678
      %v711 = vpack.c.b16 %v679, %v679
      %v712 = vpack.c.b16 %v680, %v680
      %v713 = vpack.c.b16 %v681, %v681
      %v714 = vpack.c.b16 %v682, %v682
      %v715 = vpack.c.b16 %v683, %v683
      %v716 = vpack.c.b16 %v684, %v684
      %v717 = vpack.c.b16 %v685, %v685
      %v718 = vpack.c.b16 %v686, %v686
      %v719 = vpack.c.b16 %v687, %v687
      %vm752 = vcmask 125952
      %753 = vst.msk [vmem:[%s172] sm:$0xf] %vm752, %v688
      %754 = vst.msk [vmem:[%s172 + $0x4] sm:$0xf] %vm752, %v689
      %755 = vst.msk [vmem:[%s172 + $0x8] sm:$0xf] %vm752, %v690
      %756 = vst.msk [vmem:[%s172 + $0xc] sm:$0xf] %vm752, %v691
      %757 = vst.msk [vmem:[%s172 + $0x10] sm:$0xf] %vm752, %v692
      %758 = vst.msk [vmem:[%s172 + $0x14] sm:$0xf] %vm752, %v693
      %759 = vst.msk [vmem:[%s172 + $0x18] sm:$0xf] %vm752, %v694
      %760 = vst.msk [vmem:[%s172 + $0x1c] sm:$0xf] %vm752, %v695
      %761 = vst.msk [vmem:[%s172 + $0x20] sm:$0xf] %vm752, %v696
      %762 = vst.msk [vmem:[%s172 + $0x24] sm:$0xf] %vm752, %v697
      %763 = vst.msk [vmem:[%s172 + $0x28] sm:$0xf] %vm752, %v698
      %764 = vst.msk [vmem:[%s172 + $0x2c] sm:$0xf] %vm752, %v699
      %765 = vst.msk [vmem:[%s172 + $0x30] sm:$0xf] %vm752, %v700
      %766 = vst.msk [vmem:[%s172 + $0x34] sm:$0xf] %vm752, %v701
      %767 = vst.msk [vmem:[%s172 + $0x38] sm:$0xf] %vm752, %v702
      %768 = vst.msk [vmem:[%s172 + $0x3c] sm:$0xf] %vm752, %v703
      %769 = vst.msk [vmem:[%s172 + $0x40] sm:$0xf] %vm752, %v704
      %770 = vst.msk [vmem:[%s172 + $0x44] sm:$0xf] %vm752, %v705
      %771 = vst.msk [vmem:[%s172 + $0x48] sm:$0xf] %vm752, %v706
      %772 = vst.msk [vmem:[%s172 + $0x4c] sm:$0xf] %vm752, %v707
      %773 = vst.msk [vmem:[%s172 + $0x50] sm:$0xf] %vm752, %v708
      %774 = vst.msk [vmem:[%s172 + $0x54] sm:$0xf] %vm752, %v709
      %775 = vst.msk [vmem:[%s172 + $0x58] sm:$0xf] %vm752, %v710
      %776 = vst.msk [vmem:[%s172 + $0x5c] sm:$0xf] %vm752, %v711
      %777 = vst.msk [vmem:[%s172 + $0x60] sm:$0xf] %vm752, %v712
      %778 = vst.msk [vmem:[%s172 + $0x64] sm:$0xf] %vm752, %v713
      %779 = vst.msk [vmem:[%s172 + $0x68] sm:$0xf] %vm752, %v714
      %780 = vst.msk [vmem:[%s172 + $0x6c] sm:$0xf] %vm752, %v715
      %781 = vst.msk [vmem:[%s172 + $0x70] sm:$0xf] %vm752, %v716
      %782 = vst.msk [vmem:[%s172 + $0x74] sm:$0xf] %vm752, %v717
      %783 = vst.msk [vmem:[%s172 + $0x78] sm:$0xf] %vm752, %v718
      %784 = vst.msk [vmem:[%s172 + $0x7c] sm:$0xf] %vm752, %v719
      %s785 = smul.u32 32, %s14
      %p786 = scmp.lt.s32.totalorder %s785, 63
      %s787 = scalar_select %p786, %s785, 63
      %s788 = smul.addr %s787, 4
      %s789 = scalar_lea.vmem %s3, %s788
      // Predicated region
      $region33: #{discriminator_forward.3} parent=31 // pred_check
        %p790 = pneg %p100
      $region34: #{discriminator_forward.3} parent=31 // pred_check_branch
        %792 = sbr.rel (%p790) target = $region36
      $region35: #{discriminator_forward.3} parent=31 // pred_region
        %s793 = smul.u32 32, %s14
      $region36: #{discriminator_forward.3} parent=31 // pred_fallthru
        _
    $region32: #{discriminator_forward.3} parent=5 // pred_fallthru
      _
    %p794 = scmp.le.s32.totalorder 2, %s9
    // Predicated region
    $region37: #{discriminator_forward.3} parent=5 // pred_check
      %p795 = pneg %p794
    $region38: #{discriminator_forward.3} parent=5 // pred_check_branch
      %797 = sbr.rel (%p795) target = $region40
    $region39: #{discriminator_forward.3} parent=5 // pred_region
      %s798 = ssub.s32 %s9, 2
      // Predicated region
      $region41: #{discriminator_forward.3} parent=39 // pred_check
        %p799 = pneg %p106
      $region42: #{discriminator_forward.3} parent=39 // pred_check_branch
        %801 = sbr.rel (%p799) target = $region44
      $region43: #{discriminator_forward.3} parent=39 // pred_region
        %s802 = smul.u32 32, %s15
        %p803 = scmp.lt.s32.totalorder %s802, 63
        %s804 = scalar_select %p803, %s802, 63
        %s805 = smul.addr %s804, 4
        %s806 = scalar_lea.vmem %s3, %s805
      $region44: #{discriminator_forward.3} parent=39 // pred_fallthru
        _
    $region40: #{discriminator_forward.3} parent=5 // pred_fallthru
      _
  $region6: #{discriminator_forward.3} parent=0 // loop_footer
    %s13 = sadd.s32 1, %s9
  $region7: #{discriminator_forward.3} parent=0 // loop_footer_branch
    %8 = sbr.rel target = $region3
  $region8: #{discriminator_forward.3} parent=0 // loop_exit
    _

// kernel: discriminator_forward.4
$region0: #{discriminator_forward.4}
  #allocation0 [shape = 'u32[]', space=smem, size = 0x4, offset = 0x4, fixed_abs, tag = 'smem constant byte address 0x4 - core index']
  #allocation1 [shape = 'u32[144,128]{1,0:T(1,128)}', space=vmem, size = 0x12000, scoped, tag = 'internal scratch']
  %s0 = inlined_call_operand.vmem [shape: bf16[128,256], index: 0, kind: input, shape index: {}]
  %s1 = inlined_call_operand.vmem [shape: bf16[256,32], index: 1, kind: input, shape index: {}]
  %s2 = inlined_call_operand.vmem [shape: f32[1,32], index: 2, kind: input, shape index: {}]
  %s3 = inlined_call_operand.vmem [shape: f32[1,32], index: 3, kind: input, shape index: {}]
  %s4 = inlined_call_operand.vmem [shape: bf16[128,32], index: 4, kind: output, shape index: {}]
  %s5 = sld [smem:[#allocation0]]
  $region49: #{discriminator_forward.4} parent=0
    _
  %s7 = ssub.s32 1, %s5
  %s8 = scalar_select 0, %s7, %s5
  loop: start=0, step=1, limit=4
  $region2: #{discriminator_forward.4} parent=0 // loop_pre_header
    _
  $region3: #{discriminator_forward.4} parent=0 // loop_header
    %s10 = sphi 0, %s14
    %p11 = scmp.ge.s32.totalorder %s10, 4
    %s20 = sphi 0, %s22
    %s23 = sphi 0, %s20
    %s24 = sphi 0, %s23
    %s40 = sphi 0, %s24
    %s44 = sphi 0, %s44
    %s46 = sphi 0, %s44
    %s47 = sphi 0, %s46
    %s61 = sphi 0, %s47
    %s65 = sphi 0, %s65
    %s67 = sphi 0, %s65
    %s68 = sphi 0, %s67
    %s82 = sphi 0, %s68
    %s86 = sphi 0, %s86
    %s88 = sphi 0, %s86
    %s89 = sphi 0, %s88
    %s103 = sphi 0, %s89
    %s109 = sphi 0, %s111
    %s112 = sphi 0, %s109
    %s113 = sphi 0, %s112
    %s129 = sphi 0, %s113
  $region4: #{discriminator_forward.4} parent=0 // loop_header_branch
    %13 = sbr.rel (%p11) target = $region8
  $region5: #{discriminator_forward.4} parent=0 // loop_body
    %s15 = ssub.s32 %s10, 1
    %s16 = ssub.s32 %s10, 2
    %s17 = sadd.s32 %s10, 1
    %s18 = ssub.s32 %s10, %s17
    %p19 = scmp.eq.s32.totalorder %s18, 0
    %s21 = sadd.s32 %s20, 1
    %s22 = scalar_select %p19, %s20, %s21
    %p25 = pneg %p19
    %p26 = scmp.eq.s32.totalorder %s10, 1
    %p27 = por %p25, %p26
    %p28 = scmp.ne.s32.totalorder %s20, %s23
    %p29 = scmp.eq.s32.totalorder %s10, 0
    %p30 = por %p28, %p29
    %p31 = scmp.ne.s32.totalorder %s20, %s23
    %p32 = scmp.eq.s32.totalorder %s15, 1
    %p33 = por %p31, %p32
    %p34 = scmp.ne.s32.totalorder %s23, %s24
    %p35 = scmp.eq.s32.totalorder %s15, 0
    %p36 = por %p34, %p35
    %p37 = scmp.ne.s32.totalorder %s23, %s24
    %p38 = scmp.eq.s32.totalorder %s16, 1
    %p39 = por %p37, %p38
    %p41 = scmp.ne.s32.totalorder %s24, %s40
    %p42 = scmp.eq.s32.totalorder %s16, 0
    %p43 = por %p41, %p42
    %s45 = sadd.s32 %s44, 1
    %p48 = scmp.eq.s32.totalorder %s10, 1
    %p49 = scmp.ne.s32.totalorder %s44, %s46
    %p50 = scmp.eq.s32.totalorder %s10, 0
    %p51 = por %p49, %p50
    %p52 = scmp.ne.s32.totalorder %s44, %s46
    %p53 = scmp.eq.s32.totalorder %s15, 1
    %p54 = por %p52, %p53
    %p55 = scmp.ne.s32.totalorder %s46, %s47
    %p56 = scmp.eq.s32.totalorder %s15, 0
    %p57 = por %p55, %p56
    %p58 = scmp.ne.s32.totalorder %s46, %s47
    %p59 = scmp.eq.s32.totalorder %s16, 1
    %p60 = por %p58, %p59
    %p62 = scmp.ne.s32.totalorder %s47, %s61
    %p63 = scmp.eq.s32.totalorder %s16, 0
    %p64 = por %p62, %p63
    %s66 = sadd.s32 %s65, 1
    %p69 = scmp.eq.s32.totalorder %s10, 1
    %p70 = scmp.ne.s32.totalorder %s65, %s67
    %p71 = scmp.eq.s32.totalorder %s10, 0
    %p72 = por %p70, %p71
    %p73 = scmp.ne.s32.totalorder %s65, %s67
    %p74 = scmp.eq.s32.totalorder %s15, 1
    %p75 = por %p73, %p74
    %p76 = scmp.ne.s32.totalorder %s67, %s68
    %p77 = scmp.eq.s32.totalorder %s15, 0
    %p78 = por %p76, %p77
    %p79 = scmp.ne.s32.totalorder %s67, %s68
    %p80 = scmp.eq.s32.totalorder %s16, 1
    %p81 = por %p79, %p80
    %p83 = scmp.ne.s32.totalorder %s68, %s82
    %p84 = scmp.eq.s32.totalorder %s16, 0
    %p85 = por %p83, %p84
    %s87 = sadd.s32 %s86, 1
    %p90 = scmp.eq.s32.totalorder %s10, 1
    %p91 = scmp.ne.s32.totalorder %s86, %s88
    %p92 = scmp.eq.s32.totalorder %s10, 0
    %p93 = por %p91, %p92
    %p94 = scmp.ne.s32.totalorder %s86, %s88
    %p95 = scmp.eq.s32.totalorder %s15, 1
    %p96 = por %p94, %p95
    %p97 = scmp.ne.s32.totalorder %s88, %s89
    %p98 = scmp.eq.s32.totalorder %s15, 0
    %p99 = por %p97, %p98
    %p100 = scmp.ne.s32.totalorder %s88, %s89
    %p101 = scmp.eq.s32.totalorder %s16, 1
    %p102 = por %p100, %p101
    %p104 = scmp.ne.s32.totalorder %s89, %s103
    %p105 = scmp.eq.s32.totalorder %s16, 0
    %p106 = por %p104, %p105
    %s107 = ssub.s32 %s10, %s17
    %p108 = scmp.eq.s32.totalorder %s107, 0
    %s110 = sadd.s32 %s109, 1
    %s111 = scalar_select %p108, %s109, %s110
    %p114 = pneg %p108
    %p115 = scmp.eq.s32.totalorder %s10, 1
    %p116 = por %p114, %p115
    %p117 = scmp.ne.s32.totalorder %s109, %s112
    %p118 = scmp.eq.s32.totalorder %s10, 0
    %p119 = por %p117, %p118
    %p120 = scmp.ne.s32.totalorder %s109, %s112
    %p121 = scmp.eq.s32.totalorder %s15, 1
    %p122 = por %p120, %p121
    %p123 = scmp.ne.s32.totalorder %s112, %s113
    %p124 = scmp.eq.s32.totalorder %s15, 0
    %p125 = por %p123, %p124
    %p126 = scmp.ne.s32.totalorder %s112, %s113
    %p127 = scmp.eq.s32.totalorder %s16, 1
    %p128 = por %p126, %p127
    %p130 = scmp.ne.s32.totalorder %s113, %s129
    %p131 = scmp.eq.s32.totalorder %s16, 0
    %p132 = por %p130, %p131
    %p133 = scmp.le.s32.totalorder 1, %s10
    %p134 = scmp.lt.s32.totalorder %s10, 3
    %p135 = pnand %p133, %p134
    %p136 = pneg %p135
    // Predicated region
    $region9: #{discriminator_forward.4} parent=5 // pred_check
      _
    $region10: #{discriminator_forward.4} parent=5 // pred_check_branch
      %138 = sbr.rel (%p135) target = $region12
    $region11: #{discriminator_forward.4} parent=5 // pred_region
      %s139 = ssub.s32 %s10, 1
      // Predicated region
      $region13: #{discriminator_forward.4} parent=11 // pred_check
        %p140 = pneg %p57
      $region14: #{discriminator_forward.4} parent=11 // pred_check_branch
        %142 = sbr.rel (%p140) target = $region16
      $region15: #{discriminator_forward.4} parent=11 // pred_region
        _
      $region16: #{discriminator_forward.4} parent=11 // pred_fallthru
        _
      // Predicated region
      $region17: #{discriminator_forward.4} parent=11 // pred_check
        %p143 = pneg %p78
      $region18: #{discriminator_forward.4} parent=11 // pred_check_branch
        %145 = sbr.rel (%p143) target = $region20
      $region19: #{discriminator_forward.4} parent=11 // pred_region
        _
      $region20: #{discriminator_forward.4} parent=11 // pred_fallthru
        _
      // Predicated region
      $region21: #{discriminator_forward.4} parent=11 // pred_check
        %p146 = pneg %p99
      $region22: #{discriminator_forward.4} parent=11 // pred_check_branch
        %148 = sbr.rel (%p146) target = $region24
      $region23: #{discriminator_forward.4} parent=11 // pred_region
        _
      $region24: #{discriminator_forward.4} parent=11 // pred_fallthru
        _
    $region12: #{discriminator_forward.4} parent=5 // pred_fallthru
      _
    %p149 = scmp.lt.s32.totalorder %s10, 2
    // Predicated region
    $region25: #{discriminator_forward.4} parent=5 // pred_check
      %p150 = pneg %p149
    $region26: #{discriminator_forward.4} parent=5 // pred_check_branch
      %152 = sbr.rel (%p150) target = $region28
    $region27: #{discriminator_forward.4} parent=5 // pred_region
      // Predicated region
      $region29: #{discriminator_forward.4} parent=27 // pred_check
        %p153 = pneg %p30
      $region30: #{discriminator_forward.4} parent=27 // pred_check_branch
        %155 = sbr.rel (%p153) target = $region32
      $region31: #{discriminator_forward.4} parent=27 // pred_region
        %s156 = smul.u32 8, %s10
        %p157 = scmp.lt.s32.totalorder %s156, 15
        %s158 = scalar_select %p157, %s156, 15
        %s159 = smul.addr %s158, 2
        %s160 = smul.addr %s159, 4
        %s161 = scalar_lea.vmem %s0, %s160
        %s162 = smul.u32 8, %s10
      $region32: #{discriminator_forward.4} parent=27 // pred_fallthru
        _
    $region28: #{discriminator_forward.4} parent=5 // pred_fallthru
      _
    %p163 = scmp.le.s32.totalorder 1, %s10
    %p164 = scmp.lt.s32.totalorder %s10, 3
    %p165 = pnand %p163, %p164
    %p166 = pneg %p165
    // Predicated region
    $region33: #{discriminator_forward.4} parent=5 // pred_check
      _
    $region34: #{discriminator_forward.4} parent=5 // pred_check_branch
      %168 = sbr.rel (%p165) target = $region36
    $region35: #{discriminator_forward.4} parent=5 // pred_region
      %s169 = ssub.s32 %s10, 1
      %s170 = smul.u32 8, %s15
      %p171 = scmp.lt.s32.totalorder %s170, 15
      %s172 = scalar_select %p171, %s170, 15
      %s173 = smul.addr %s172, 2
      %s174 = smul.addr %s173, 4
      %s175 = scalar_lea.vmem %s0, %s174
      %p176 = pneg %p36
      %p177 = pneg %p33
      %p178 = pneg %p57
      %p179 = pneg %p54
      %p180 = pneg %p78
      %p181 = pneg %p75
      %p182 = pneg %p99
      %p183 = pneg %p96
      %p184 = pneg %p125
      %p185 = pneg %p122
      %s186 = smul.u32 8, %s15
      %p187 = scmp.lt.s32.totalorder %s186, 15
      %s188 = scalar_select %p187, %s186, 15
      %s189 = smul.addr %s188, 4
      %s190 = scalar_lea.vmem %s4, %s189
      %s191 = smul.u32 8, %s15
      %p192 = scmp.lt.s32.totalorder %s191, 15
      %s193 = scalar_select %p192, %s191, 15
      %s194 = smul.addr %s193, 2
      %s195 = smul.addr %s194, 4
      %s196 = scalar_lea.vmem %s0, %s195
      %s197 = smul.u32 8, %s15
      %s198 = smul.u32 8, %s15
      %p199 = scmp.lt.s32.totalorder %s198, 15
      %s200 = scalar_select %p199, %s198, 15
      %s201 = smul.addr %s200, 4
      %s202 = scalar_lea.vmem %s4, %s201
      %s203 = smul.u32 8, %s15
      %v205 = vld [vmem:[%s196] sm:$0xff]
      %v206 = vld [vmem:[%s196 + $0x8] sm:$0xff]
      %v207 = vld [vmem:[%s196 + $0x10] sm:$0xff]
      %v208 = vld [vmem:[%s196 + $0x18] sm:$0xff]
      %v209 = vld [vmem:[%s196 + $0x20] sm:$0xff]
      %v210 = vld [vmem:[%s196 + $0x28] sm:$0xff]
      %v211 = vld [vmem:[%s196 + $0x30] sm:$0xff]
      %v212 = vld [vmem:[%s196 + $0x38] sm:$0xff]
      %v213 = vld [vmem:[%s1] sm:$0xf]
      %v214 = vld [vmem:[%s1 + $0x4] sm:$0xf]
      %v215 = vld [vmem:[%s1 + $0x8] sm:$0xf]
      %v216 = vld [vmem:[%s1 + $0xc] sm:$0xf]
      %v217 = vld [vmem:[%s1 + $0x10] sm:$0xf]
      %v218 = vld [vmem:[%s1 + $0x14] sm:$0xf]
      %v219 = vld [vmem:[%s1 + $0x18] sm:$0xf]
      %v220 = vld [vmem:[%s1 + $0x1c] sm:$0xf]
      %v221 = vld [vmem:[%s1 + $0x20] sm:$0xf]
      %v222 = vld [vmem:[%s1 + $0x24] sm:$0xf]
      %v223 = vld [vmem:[%s1 + $0x28] sm:$0xf]
      %v224 = vld [vmem:[%s1 + $0x2c] sm:$0xf]
      %v225 = vld [vmem:[%s1 + $0x30] sm:$0xf]
      %v226 = vld [vmem:[%s1 + $0x34] sm:$0xf]
      %v227 = vld [vmem:[%s1 + $0x38] sm:$0xf]
      %v228 = vld [vmem:[%s1 + $0x3c] sm:$0xf]
      %v229 = vld [vmem:[%s1 + $0x40] sm:$0xf]
      %v230 = vld [vmem:[%s1 + $0x44] sm:$0xf]
      %v231 = vld [vmem:[%s1 + $0x48] sm:$0xf]
      %v232 = vld [vmem:[%s1 + $0x4c] sm:$0xf]
      %v233 = vld [vmem:[%s1 + $0x50] sm:$0xf]
      %v234 = vld [vmem:[%s1 + $0x54] sm:$0xf]
      %v235 = vld [vmem:[%s1 + $0x58] sm:$0xf]
      %v236 = vld [vmem:[%s1 + $0x5c] sm:$0xf]
      %v237 = vld [vmem:[%s1 + $0x60] sm:$0xf]
      %v238 = vld [vmem:[%s1 + $0x64] sm:$0xf]
      %v239 = vld [vmem:[%s1 + $0x68] sm:$0xf]
      %v240 = vld [vmem:[%s1 + $0x6c] sm:$0xf]
      %v241 = vld [vmem:[%s1 + $0x70] sm:$0xf]
      %v242 = vld [vmem:[%s1 + $0x74] sm:$0xf]
      %v243 = vld [vmem:[%s1 + $0x78] sm:$0xf]
      %v244 = vld [vmem:[%s1 + $0x7c] sm:$0xf]
      %v253 = vunpack.c.l.b16 %v205
      %v254 = vunpack.c.h.b16 %v205
      %v255 = vunpack.c.l.b16 %v206
      %v256 = vunpack.c.h.b16 %v206
      %v257 = vunpack.c.l.b16 %v207
      %v258 = vunpack.c.h.b16 %v207
      %v259 = vunpack.c.l.b16 %v208
      %v260 = vunpack.c.h.b16 %v208
      %v261 = vunpack.c.l.b16 %v209
      %v262 = vunpack.c.h.b16 %v209
      %v263 = vunpack.c.l.b16 %v210
      %v264 = vunpack.c.h.b16 %v210
      %v265 = vunpack.c.l.b16 %v211
      %v266 = vunpack.c.h.b16 %v211
      %v267 = vunpack.c.l.b16 %v212
      %v268 = vunpack.c.h.b16 %v212
      %v269 = vpack.c.b16 %v255, %v253
      %v270 = vpack.c.b16 %v256, %v254
      %v271 = vpack.c.b16 %v259, %v257
      %v272 = vpack.c.b16 %v260, %v258
      %v273 = vpack.c.b16 %v263, %v261
      %v274 = vpack.c.b16 %v264, %v262
      %v275 = vpack.c.b16 %v267, %v265
      %v276 = vpack.c.b16 %v268, %v266
      %v317 = vunpack.c.l.b16 %v213
      %v318 = vunpack.c.l.b16 %v214
      %v319 = vunpack.c.l.b16 %v215
      %v320 = vunpack.c.l.b16 %v216
      %v321 = vunpack.c.l.b16 %v217
      %v322 = vunpack.c.l.b16 %v218
      %v323 = vunpack.c.l.b16 %v219
      %v324 = vunpack.c.l.b16 %v220
      %v325 = vunpack.c.l.b16 %v221
      %v326 = vunpack.c.l.b16 %v222
      %v327 = vunpack.c.l.b16 %v223
      %v328 = vunpack.c.l.b16 %v224
      %v329 = vunpack.c.l.b16 %v225
      %v330 = vunpack.c.l.b16 %v226
      %v331 = vunpack.c.l.b16 %v227
      %v332 = vunpack.c.l.b16 %v228
      %v333 = vunpack.c.l.b16 %v229
      %v334 = vunpack.c.l.b16 %v230
      %v335 = vunpack.c.l.b16 %v231
      %v336 = vunpack.c.l.b16 %v232
      %v337 = vunpack.c.l.b16 %v233
      %v338 = vunpack.c.l.b16 %v234
      %v339 = vunpack.c.l.b16 %v235
      %v340 = vunpack.c.l.b16 %v236
      %v341 = vunpack.c.l.b16 %v237
      %v342 = vunpack.c.l.b16 %v238
      %v343 = vunpack.c.l.b16 %v239
      %v344 = vunpack.c.l.b16 %v240
      %v345 = vunpack.c.l.b16 %v241
      %v346 = vunpack.c.l.b16 %v242
      %v347 = vunpack.c.l.b16 %v243
      %v348 = vunpack.c.l.b16 %v244
      %v349 = vpack.c.b16 %v318, %v317
      %v350 = vpack.c.b16 %v320, %v319
      %v351 = vpack.c.b16 %v322, %v321
      %v352 = vpack.c.b16 %v324, %v323
      %v353 = vpack.c.b16 %v326, %v325
      %v354 = vpack.c.b16 %v328, %v327
      %v355 = vpack.c.b16 %v330, %v329
      %v356 = vpack.c.b16 %v332, %v331
      %v357 = vpack.c.b16 %v334, %v333
      %v358 = vpack.c.b16 %v336, %v335
      %v359 = vpack.c.b16 %v338, %v337
      %v360 = vpack.c.b16 %v340, %v339
      %v361 = vpack.c.b16 %v342, %v341
      %v362 = vpack.c.b16 %v344, %v343
      %v363 = vpack.c.b16 %v346, %v345
      %v364 = vpack.c.b16 %v348, %v347
      %381 = vmatprep.subr.bf16.mxu0 0
      %382 = vmatpush1.bf16.msra.mxu0 %v356
      %383 = vmatprep.subr.bf16.mxu0 0
      %384 = vmatpush1.bf16.msra.mxu0 %v355
      %385 = vmatprep.subr.bf16.mxu0 0
      %386 = vmatpush1.bf16.msra.mxu0 %v354
      %387 = vmatprep.subr.bf16.mxu0 0
      %388 = vmatpush1.bf16.msra.mxu0 %v353
      %389 = vmatprep.subr.bf16.mxu0 0
      %390 = vmatpush1.bf16.msra.mxu0 %v352
      %391 = vmatprep.subr.bf16.mxu0 0
      %392 = vmatpush1.bf16.msra.mxu0 %v351
      %393 = vmatprep.subr.bf16.mxu0 0
      %394 = vmatpush1.bf16.msra.mxu0 %v350
      %395 = vmatprep.subr.bf16.mxu0 0
      %396 = vmatpush1.bf16.msra.mxu0 %v349
      %397 = vmatprep.subr.bf16.mxu0 0
      %398 = vmatpush2.bf16.msra.mxu0 %v364
      %399 = vmatprep.subr.bf16.mxu0 0
      %400 = vmatpush2.bf16.msra.mxu0 %v363
      %401 = vmatprep.subr.bf16.mxu0 0
      %402 = vmatpush2.bf16.msra.mxu0 %v362
      %403 = vmatprep.subr.bf16.mxu0 0
      %404 = vmatpush2.bf16.msra.mxu0 %v361
      %405 = vmatprep.subr.bf16.mxu0 0
      %406 = vmatpush2.bf16.msra.mxu0 %v360
      %407 = vmatprep.subr.bf16.mxu0 0
      %408 = vmatpush2.bf16.msra.mxu0 %v359
      %409 = vmatprep.subr.bf16.mxu0 0
      %410 = vmatpush2.bf16.msra.mxu0 %v358
      %411 = vmatprep.subr.bf16.mxu0 0
      %412 = vmatpush2.bf16.msra.mxu0 %v357
      %413 = vmatprep.mubr.bf16.mxu0 %v270
      %414 = vmatmul.mubr.bf16.gmra.mxu0 %v269
      %v415 = vpop.f32.mrf.mxu0
      %v416 = vadd.f32 0.0, %v415
      %v417 = vpop.f32.mrf.mxu0
      %v418 = vpop.f32.mrf.mxu0
      %v419 = vadd.f32 0.0, %v418
      %v420 = vpop.f32.mrf.mxu0
      %421 = vmatprep.mubr.bf16.mxu0 %v272
      %422 = vmatmul.mubr.bf16.gmra.mxu0 %v271
      %v423 = vpop.f32.mrf.mxu0
      %v424 = vadd.f32 0.0, %v423
      %v425 = vpop.f32.mrf.mxu0
      %v426 = vpop.f32.mrf.mxu0
      %v427 = vadd.f32 0.0, %v426
      %v428 = vpop.f32.mrf.mxu0
      %429 = vmatprep.mubr.bf16.mxu0 %v274
      %430 = vmatmul.mubr.bf16.gmra.mxu0 %v273
      %v431 = vpop.f32.mrf.mxu0
      %v432 = vadd.f32 0.0, %v431
      %v433 = vpop.f32.mrf.mxu0
      %v434 = vpop.f32.mrf.mxu0
      %v435 = vadd.f32 0.0, %v434
      %v436 = vpop.f32.mrf.mxu0
      %437 = vmatprep.mubr.bf16.mxu0 %v276
      %438 = vmatmul.mubr.bf16.gmra.mxu0 %v275
      %v439 = vpop.f32.mrf.mxu0
      %v440 = vadd.f32 0.0, %v439
      %v441 = vpop.f32.mrf.mxu0
      %v442 = vpop.f32.mrf.mxu0
      %v443 = vadd.f32 0.0, %v442
      %v444 = vpop.f32.mrf.mxu0
      %445 = vdwg.mxu0
      %vm446 = vcmask 261120
      %v447 = vsel %vm446, %v416, 0.0
      %v448 = vsel %vm446, %v419, 0.0
      %v449 = vadd.f32 %v447, %v448
      %v450 = vsel %vm446, %v424, 0.0
      %v451 = vadd.f32 %v449, %v450
      %v452 = vsel %vm446, %v427, 0.0
      %v453 = vadd.f32 %v451, %v452
      %v454 = vsel %vm446, %v432, 0.0
      %v455 = vadd.f32 %v453, %v454
      %v456 = vsel %vm446, %v435, 0.0
      %v457 = vadd.f32 %v455, %v456
      %v458 = vsel %vm446, %v440, 0.0
      %v459 = vadd.f32 %v457, %v458
      %v460 = vsel %vm446, %v443, 0.0
      %v461 = vadd.f32 %v459, %v460
      %v462 = vrot.slane %v461, 4
      %v463 = vadd.f32 %v461, %v462
      %v464 = vrot.slane %v463, 2
      %v465 = vadd.f32 %v463, %v464
      %v466 = vrot.slane %v465, 1
      %v467 = vadd.f32 %v465, %v466
      %v468 = vmul.f32 %v467, 0.015625
      %v469 = vmul.f32 %v416, %v416
      %v470 = vmul.f32 %v419, %v419
      %v471 = vmul.f32 %v424, %v424
      %v472 = vmul.f32 %v427, %v427
      %v473 = vmul.f32 %v432, %v432
      %v474 = vmul.f32 %v435, %v435
      %v475 = vmul.f32 %v440, %v440
      %v476 = vmul.f32 %v443, %v443
      %v477 = vsel %vm446, %v469, 0.0
      %v478 = vsel %vm446, %v470, 0.0
      %v479 = vadd.f32 %v477, %v478
      %v480 = vsel %vm446, %v471, 0.0
      %v481 = vadd.f32 %v479, %v480
      %v482 = vsel %vm446, %v472, 0.0
      %v483 = vadd.f32 %v481, %v482
      %v484 = vsel %vm446, %v473, 0.0
      %v485 = vadd.f32 %v483, %v484
      %v486 = vsel %vm446, %v474, 0.0
      %v487 = vadd.f32 %v485, %v486
      %v488 = vsel %vm446, %v475, 0.0
      %v489 = vadd.f32 %v487, %v488
      %v490 = vsel %vm446, %v476, 0.0
      %v491 = vadd.f32 %v489, %v490
      %v492 = vrot.slane %v491, 4
      %v493 = vadd.f32 %v491, %v492
      %v494 = vrot.slane %v493, 2
      %v495 = vadd.f32 %v493, %v494
      %v496 = vrot.slane %v495, 1
      %v497 = vadd.f32 %v495, %v496
      %v498 = vmul.f32 %v497, 0.015625
      %v499 = vmul.f32 %v468, %v468
      %v500 = vsub.f32 %v498, %v499
      %v501 = vmax.f32 %v500, 0.0
      %v502 = vsub.f32 %v416, %v468
      %v503 = vsub.f32 %v419, %v468
      %v504 = vsub.f32 %v424, %v468
      %v505 = vsub.f32 %v427, %v468
      %v506 = vsub.f32 %v432, %v468
      %v507 = vsub.f32 %v435, %v468
      %v508 = vsub.f32 %v440, %v468
      %v509 = vsub.f32 %v443, %v468
      %v510 = vadd.f32 %v501, 1e-05
      %v511 = vrsqrt.pop %v510
      %v512 = vmul.f32 %v502, %v511
      %v513 = vmul.f32 %v503, %v511
      %v514 = vmul.f32 %v504, %v511
      %v515 = vmul.f32 %v505, %v511
      %v516 = vmul.f32 %v506, %v511
      %v517 = vmul.f32 %v507, %v511
      %v518 = vmul.f32 %v508, %v511
      %v519 = vmul.f32 %v509, %v511
      %v520 = vld [vmem:[%s2] sm:$0x1]
      %v522 = vlaneseq
      %v523 = vshrl.u32 %v522, 7
      %v524 = vsub.s32 0, %v523
      %v525 = vrot.slane %v520, %v524
      %v527 = vmul.f32 %v512, %v525
      %v528 = vmul.f32 %v513, %v525
      %v529 = vmul.f32 %v514, %v525
      %v530 = vmul.f32 %v515, %v525
      %v531 = vmul.f32 %v516, %v525
      %v532 = vmul.f32 %v517, %v525
      %v533 = vmul.f32 %v518, %v525
      %v534 = vmul.f32 %v519, %v525
      %v535 = vld [vmem:[%s3] sm:$0x1]
      %v537 = vlaneseq
      %v538 = vshrl.u32 %v537, 7
      %v539 = vsub.s32 0, %v538
      %v540 = vrot.slane %v535, %v539
      %v542 = vadd.f32 %v527, %v540
      %v543 = vadd.f32 %v528, %v540
      %v544 = vadd.f32 %v529, %v540
      %v545 = vadd.f32 %v530, %v540
      %v546 = vadd.f32 %v531, %v540
      %v547 = vadd.f32 %v532, %v540
      %v548 = vadd.f32 %v533, %v540
      %v549 = vadd.f32 %v534, %v540
      %vm550 = vcmp.ge.f32.partialorder %v542, 0.0
      %vm551 = vcmp.ge.f32.partialorder %v543, 0.0
      %vm552 = vcmp.ge.f32.partialorder %v544, 0.0
      %vm553 = vcmp.ge.f32.partialorder %v545, 0.0
      %vm554 = vcmp.ge.f32.partialorder %v546, 0.0
      %vm555 = vcmp.ge.f32.partialorder %v547, 0.0
      %vm556 = vcmp.ge.f32.partialorder %v548, 0.0
      %vm557 = vcmp.ge.f32.partialorder %v549, 0.0
      %v558 = vmul.f32 %v542, 0.2
      %v559 = vmul.f32 %v543, 0.2
      %v560 = vmul.f32 %v544, 0.2
      %v561 = vmul.f32 %v545, 0.2
      %v562 = vmul.f32 %v546, 0.2
      %v563 = vmul.f32 %v547, 0.2
      %v564 = vmul.f32 %v548, 0.2
      %v565 = vmul.f32 %v549, 0.2
      %v566 = vsel %vm550, %v542, %v558
      %v567 = vsel %vm551, %v543, %v559
      %v568 = vsel %vm552, %v544, %v560
      %v569 = vsel %vm553, %v545, %v561
      %v570 = vsel %vm554, %v546, %v562
      %v571 = vsel %vm555, %v547, %v563
      %v572 = vsel %vm556, %v548, %v564
      %v573 = vsel %vm557, %v549, %v565
      %v574 = vpack.c.bf16 %v567, %v566
      %v575 = vpack.c.bf16 %v569, %v568
      %v576 = vpack.c.bf16 %v571, %v570
      %v577 = vpack.c.bf16 %v573, %v572
      %v582 = vunpack.c.l.b16 %v574
      %v583 = vunpack.c.h.b16 %v574
      %v584 = vunpack.c.l.b16 %v575
      %v585 = vunpack.c.h.b16 %v575
      %v586 = vunpack.c.l.b16 %v576
      %v587 = vunpack.c.h.b16 %v576
      %v588 = vunpack.c.l.b16 %v577
      %v589 = vunpack.c.h.b16 %v577
      %v590 = vpack.c.b16 %v582, %v582
      %v591 = vpack.c.b16 %v583, %v583
      %v592 = vpack.c.b16 %v584, %v584
      %v593 = vpack.c.b16 %v585, %v585
      %v594 = vpack.c.b16 %v586, %v586
      %v595 = vpack.c.b16 %v587, %v587
      %v596 = vpack.c.b16 %v588, %v588
      %v597 = vpack.c.b16 %v589, %v589
      %vm606 = vcmask 257024
      %607 = vst.msk [vmem:[%s202] sm:$0xf] %vm606, %v590
      %608 = vst.msk [vmem:[%s202 + $0x4] sm:$0xf] %vm606, %v591
      %609 = vst.msk [vmem:[%s202 + $0x8] sm:$0xf] %vm606, %v592
      %610 = vst.msk [vmem:[%s202 + $0xc] sm:$0xf] %vm606, %v593
      %611 = vst.msk [vmem:[%s202 + $0x10] sm:$0xf] %vm606, %v594
      %612 = vst.msk [vmem:[%s202 + $0x14] sm:$0xf] %vm606, %v595
      %613 = vst.msk [vmem:[%s202 + $0x18] sm:$0xf] %vm606, %v596
      %614 = vst.msk [vmem:[%s202 + $0x1c] sm:$0xf] %vm606, %v597
      %s615 = smul.u32 8, %s15
      %p616 = scmp.lt.s32.totalorder %s615, 15
      %s617 = scalar_select %p616, %s615, 15
      %s618 = smul.addr %s617, 4
      %s619 = scalar_lea.vmem %s4, %s618
      // Predicated region
      $region37: #{discriminator_forward.4} parent=35 // pred_check
        %p620 = pneg %p122
      $region38: #{discriminator_forward.4} parent=35 // pred_check_branch
        %622 = sbr.rel (%p620) target = $region40
      $region39: #{discriminator_forward.4} parent=35 // pred_region
        %s623 = smul.u32 8, %s15
      $region40: #{discriminator_forward.4} parent=35 // pred_fallthru
        _
    $region36: #{discriminator_forward.4} parent=5 // pred_fallthru
      _
    %p624 = scmp.le.s32.totalorder 2, %s10
    // Predicated region
    $region41: #{discriminator_forward.4} parent=5 // pred_check
      %p625 = pneg %p624
    $region42: #{discriminator_forward.4} parent=5 // pred_check_branch
      %627 = sbr.rel (%p625) target = $region44
    $region43: #{discriminator_forward.4} parent=5 // pred_region
      %s628 = ssub.s32 %s10, 2
      // Predicated region
      $region45: #{discriminator_forward.4} parent=43 // pred_check
        %p629 = pneg %p128
      $region46: #{discriminator_forward.4} parent=43 // pred_check_branch
        %631 = sbr.rel (%p629) target = $region48
      $region47: #{discriminator_forward.4} parent=43 // pred_region
        %s632 = smul.u32 8, %s16
        %p633 = scmp.lt.s32.totalorder %s632, 15
        %s634 = scalar_select %p633, %s632, 15
        %s635 = smul.addr %s634, 4
        %s636 = scalar_lea.vmem %s4, %s635
      $region48: #{discriminator_forward.4} parent=43 // pred_fallthru
        _
    $region44: #{discriminator_forward.4} parent=5 // pred_fallthru
      _
  $region6: #{discriminator_forward.4} parent=0 // loop_footer
    %s14 = sadd.s32 1, %s10
  $region7: #{discriminator_forward.4} parent=0 // loop_footer_branch
    %9 = sbr.rel target = $region3
  $region8: #{discriminator_forward.4} parent=0 // loop_exit
    _

// kernel: discriminator_forward.5
$region0: #{discriminator_forward.5}
  #allocation0 [shape = 'u32[]', space=smem, size = 0x4, offset = 0x4, fixed_abs, tag = 'smem constant byte address 0x4 - core index']
  #allocation1 [shape = 'u32[144,128]{1,0:T(1,128)}', space=vmem, size = 0x12000, scoped, tag = 'internal scratch']
  %s0 = inlined_call_operand.vmem [shape: bf16[32,512], index: 0, kind: input, shape index: {}]
  %s1 = inlined_call_operand.vmem [shape: bf16[512,64], index: 1, kind: input, shape index: {}]
  %s2 = inlined_call_operand.vmem [shape: f32[1,64], index: 2, kind: input, shape index: {}]
  %s3 = inlined_call_operand.vmem [shape: f32[1,64], index: 3, kind: input, shape index: {}]
  %s4 = inlined_call_operand.vmem [shape: f32[16,64], index: 4, kind: input, shape index: {}]
  %s5 = inlined_call_operand.vmem [shape: f32[16,64], index: 5, kind: input, shape index: {}]
  %s6 = inlined_call_operand.hbm [shape: f32[32,64], index: 6, kind: output, shape index: {0}]
  %s7 = inlined_call_operand.vmem [shape: f32[2,1,1], index: 7, kind: output, shape index: {1}]
  %s8 = inlined_call_operand.vmem [shape: f32[2,1,1], index: 8, kind: output, shape index: {2}]
  %9 = xla_tuple %s6, %s7, %s8
  %s10 = sld [smem:[#allocation0]]
  $region73: #{discriminator_forward.5} parent=0
    _
  %s12 = ssub.s32 1, %s10
  %s13 = scalar_select 0, %s12, %s10
  $region1: #{discriminator_forward.5} parent=0
    #allocation2 [shape = 'u8[16384]{0}', space=vmem, size = 0x4000, scoped, tag = 'output window, operand 0']
    #allocation3 [shape = 's32[2]{0}', space=sflag, size = 0x8, scoped, tag = 'scoped memory for discriminator_forward.5']
    %14 = vsyncpa [#allocation3], 0
    %s15 = scalar_lea.sflag [#allocation3], 1
    %16 = vsyncpa %s15, 0
    loop: start=0, step=1, limit=4
    $region2: #{discriminator_forward.5} parent=1 // loop_pre_header
      _
    $region3: #{discriminator_forward.5} parent=1 // loop_header
      %s18 = sphi 0, %s22
      %p19 = scmp.ge.s32.totalorder %s18, 4
      %s28 = sphi 0, %s30
      %s31 = sphi 0, %s28
      %s32 = sphi 0, %s31
      %s48 = sphi 0, %s32
      %s52 = sphi 0, %s52
      %s54 = sphi 0, %s52
      %s55 = sphi 0, %s54
      %s69 = sphi 0, %s55
      %s73 = sphi 0, %s73
      %s75 = sphi 0, %s73
      %s76 = sphi 0, %s75
      %s90 = sphi 0, %s76
      %s94 = sphi 0, %s94
      %s96 = sphi 0, %s94
      %s97 = sphi 0, %s96
      %s111 = sphi 0, %s97
      %s115 = sphi 0, %s115
      %s117 = sphi 0, %s115
      %s118 = sphi 0, %s117
      %s132 = sphi 0, %s118
      %s136 = sphi 0, %s136
      %s138 = sphi 0, %s136
      %s139 = sphi 0, %s138
      %s153 = sphi 0, %s139
      %s159 = sphi 0, %s161
      %s162 = sphi 0, %s159
      %s163 = sphi 0, %s162
      %s179 = sphi 0, %s163
      %s185 = sphi 0, %s187
      %s188 = sphi 0, %s185
      %s189 = sphi 0, %s188
      %s205 = sphi 0, %s189
      %s211 = sphi 0, %s213
      %s214 = sphi 0, %s211
      %s215 = sphi 0, %s214
      %s231 = sphi 0, %s215
    $region4: #{discriminator_forward.5} parent=1 // loop_header_branch
      %21 = sbr.rel (%p19) target = $region8
    $region5: #{discriminator_forward.5} parent=1 // loop_body
      %s23 = ssub.s32 %s18, 1
      %s24 = ssub.s32 %s18, 2
      %s25 = sadd.s32 %s18, 1
      %s26 = ssub.s32 %s18, %s25
      %p27 = scmp.eq.s32.totalorder %s26, 0
      %s29 = sadd.s32 %s28, 1
      %s30 = scalar_select %p27, %s28, %s29
      %p33 = pneg %p27
      %p34 = scmp.eq.s32.totalorder %s18, 1
      %p35 = por %p33, %p34
      %p36 = scmp.ne.s32.totalorder %s28, %s31
      %p37 = scmp.eq.s32.totalorder %s18, 0
      %p38 = por %p36, %p37
      %p39 = scmp.ne.s32.totalorder %s28, %s31
      %p40 = scmp.eq.s32.totalorder %s23, 1
      %p41 = por %p39, %p40
      %p42 = scmp.ne.s32.totalorder %s31, %s32
      %p43 = scmp.eq.s32.totalorder %s23, 0
      %p44 = por %p42, %p43
      %p45 = scmp.ne.s32.totalorder %s31, %s32
      %p46 = scmp.eq.s32.totalorder %s24, 1
      %p47 = por %p45, %p46
      %p49 = scmp.ne.s32.totalorder %s32, %s48
      %p50 = scmp.eq.s32.totalorder %s24, 0
      %p51 = por %p49, %p50
      %s53 = sadd.s32 %s52, 1
      %p56 = scmp.eq.s32.totalorder %s18, 1
      %p57 = scmp.ne.s32.totalorder %s52, %s54
      %p58 = scmp.eq.s32.totalorder %s18, 0
      %p59 = por %p57, %p58
      %p60 = scmp.ne.s32.totalorder %s52, %s54
      %p61 = scmp.eq.s32.totalorder %s23, 1
      %p62 = por %p60, %p61
      %p63 = scmp.ne.s32.totalorder %s54, %s55
      %p64 = scmp.eq.s32.totalorder %s23, 0
      %p65 = por %p63, %p64
      %p66 = scmp.ne.s32.totalorder %s54, %s55
      %p67 = scmp.eq.s32.totalorder %s24, 1
      %p68 = por %p66, %p67
      %p70 = scmp.ne.s32.totalorder %s55, %s69
      %p71 = scmp.eq.s32.totalorder %s24, 0
      %p72 = por %p70, %p71
      %s74 = sadd.s32 %s73, 1
      %p77 = scmp.eq.s32.totalorder %s18, 1
      %p78 = scmp.ne.s32.totalorder %s73, %s75
      %p79 = scmp.eq.s32.totalorder %s18, 0
      %p80 = por %p78, %p79
      %p81 = scmp.ne.s32.totalorder %s73, %s75
      %p82 = scmp.eq.s32.totalorder %s23, 1
      %p83 = por %p81, %p82
      %p84 = scmp.ne.s32.totalorder %s75, %s76
      %p85 = scmp.eq.s32.totalorder %s23, 0
      %p86 = por %p84, %p85
      %p87 = scmp.ne.s32.totalorder %s75, %s76
      %p88 = scmp.eq.s32.totalorder %s24, 1
      %p89 = por %p87, %p88
      %p91 = scmp.ne.s32.totalorder %s76, %s90
      %p92 = scmp.eq.s32.totalorder %s24, 0
      %p93 = por %p91, %p92
      %s95 = sadd.s32 %s94, 1
      %p98 = scmp.eq.s32.totalorder %s18, 1
      %p99 = scmp.ne.s32.totalorder %s94, %s96
      %p100 = scmp.eq.s32.totalorder %s18, 0
      %p101 = por %p99, %p100
      %p102 = scmp.ne.s32.totalorder %s94, %s96
      %p103 = scmp.eq.s32.totalorder %s23, 1
      %p104 = por %p102, %p103
      %p105 = scmp.ne.s32.totalorder %s96, %s97
      %p106 = scmp.eq.s32.totalorder %s23, 0
      %p107 = por %p105, %p106
      %p108 = scmp.ne.s32.totalorder %s96, %s97
      %p109 = scmp.eq.s32.totalorder %s24, 1
      %p110 = por %p108, %p109
      %p112 = scmp.ne.s32.totalorder %s97, %s111
      %p113 = scmp.eq.s32.totalorder %s24, 0
      %p114 = por %p112, %p113
      %s116 = sadd.s32 %s115, 1
      %p119 = scmp.eq.s32.totalorder %s18, 1
      %p120 = scmp.ne.s32.totalorder %s115, %s117
      %p121 = scmp.eq.s32.totalorder %s18, 0
      %p122 = por %p120, %p121
      %p123 = scmp.ne.s32.totalorder %s115, %s117
      %p124 = scmp.eq.s32.totalorder %s23, 1
      %p125 = por %p123, %p124
      %p126 = scmp.ne.s32.totalorder %s117, %s118
      %p127 = scmp.eq.s32.totalorder %s23, 0
      %p128 = por %p126, %p127
      %p129 = scmp.ne.s32.totalorder %s117, %s118
      %p130 = scmp.eq.s32.totalorder %s24, 1
      %p131 = por %p129, %p130
      %p133 = scmp.ne.s32.totalorder %s118, %s132
      %p134 = scmp.eq.s32.totalorder %s24, 0
      %p135 = por %p133, %p134
      %s137 = sadd.s32 %s136, 1
      %p140 = scmp.eq.s32.totalorder %s18, 1
      %p141 = scmp.ne.s32.totalorder %s136, %s138
      %p142 = scmp.eq.s32.totalorder %s18, 0
      %p143 = por %p141, %p142
      %p144 = scmp.ne.s32.totalorder %s136, %s138
      %p145 = scmp.eq.s32.totalorder %s23, 1
      %p146 = por %p144, %p145
      %p147 = scmp.ne.s32.totalorder %s138, %s139
      %p148 = scmp.eq.s32.totalorder %s23, 0
      %p149 = por %p147, %p148
      %p150 = scmp.ne.s32.totalorder %s138, %s139
      %p151 = scmp.eq.s32.totalorder %s24, 1
      %p152 = por %p150, %p151
      %p154 = scmp.ne.s32.totalorder %s139, %s153
      %p155 = scmp.eq.s32.totalorder %s24, 0
      %p156 = por %p154, %p155
      %s157 = ssub.s32 %s18, %s25
      %p158 = scmp.eq.s32.totalorder %s157, 0
      %s160 = sadd.s32 %s159, 1
      %s161 = scalar_select %p158, %s159, %s160
      %p164 = pneg %p158
      %p165 = scmp.eq.s32.totalorder %s18, 1
      %p166 = por %p164, %p165
      %p167 = scmp.ne.s32.totalorder %s159, %s162
      %p168 = scmp.eq.s32.totalorder %s18, 0
      %p169 = por %p167, %p168
      %p170 = scmp.ne.s32.totalorder %s159, %s162
      %p171 = scmp.eq.s32.totalorder %s23, 1
      %p172 = por %p170, %p171
      %p173 = scmp.ne.s32.totalorder %s162, %s163
      %p174 = scmp.eq.s32.totalorder %s23, 0
      %p175 = por %p173, %p174
      %p176 = scmp.ne.s32.totalorder %s162, %s163
      %p177 = scmp.eq.s32.totalorder %s24, 1
      %p178 = por %p176, %p177
      %p180 = scmp.ne.s32.totalorder %s163, %s179
      %p181 = scmp.eq.s32.totalorder %s24, 0
      %p182 = por %p180, %p181
      %s183 = ssub.s32 %s18, %s25
      %p184 = scmp.eq.s32.totalorder %s183, 0
      %s186 = sadd.s32 %s185, 1
      %s187 = scalar_select %p184, %s185, %s186
      %p190 = pneg %p184
      %p191 = scmp.eq.s32.totalorder %s18, 1
      %p192 = por %p190, %p191
      %p193 = scmp.ne.s32.totalorder %s185, %s188
      %p194 = scmp.eq.s32.totalorder %s18, 0
      %p195 = por %p193, %p194
      %p196 = scmp.ne.s32.totalorder %s185, %s188
      %p197 = scmp.eq.s32.totalorder %s23, 1
      %p198 = por %p196, %p197
      %p199 = scmp.ne.s32.totalorder %s188, %s189
      %p200 = scmp.eq.s32.totalorder %s23, 0
      %p201 = por %p199, %p200
      %p202 = scmp.ne.s32.totalorder %s188, %s189
      %p203 = scmp.eq.s32.totalorder %s24, 1
      %p204 = por %p202, %p203
      %p206 = scmp.ne.s32.totalorder %s189, %s205
      %p207 = scmp.eq.s32.totalorder %s24, 0
      %p208 = por %p206, %p207
      %s209 = ssub.s32 %s18, %s25
      %p210 = scmp.eq.s32.totalorder %s209, 0
      %s212 = sadd.s32 %s211, 1
      %s213 = scalar_select %p210, %s211, %s212
      %p216 = pneg %p210
      %p217 = scmp.eq.s32.totalorder %s18, 1
      %p218 = por %p216, %p217
      %p219 = scmp.ne.s32.totalorder %s211, %s214
      %p220 = scmp.eq.s32.totalorder %s18, 0
      %p221 = por %p219, %p220
      %p222 = scmp.ne.s32.totalorder %s211, %s214
      %p223 = scmp.eq.s32.totalorder %s23, 1
      %p224 = por %p222, %p223
      %p225 = scmp.ne.s32.totalorder %s214, %s215
      %p226 = scmp.eq.s32.totalorder %s23, 0
      %p227 = por %p225, %p226
      %p228 = scmp.ne.s32.totalorder %s214, %s215
      %p229 = scmp.eq.s32.totalorder %s24, 1
      %p230 = por %p228, %p229
      %p232 = scmp.ne.s32.totalorder %s215, %s231
      %p233 = scmp.eq.s32.totalorder %s24, 0
      %p234 = por %p232, %p233
      %p235 = scmp.le.s32.totalorder 1, %s18
      %p236 = scmp.lt.s32.totalorder %s18, 3
      %p237 = pnand %p235, %p236
      %p238 = pneg %p237
      // Predicated region
      $region9: #{discriminator_forward.5} parent=5 // pred_check
        _
      $region10: #{discriminator_forward.5} parent=5 // pred_check_branch
        %240 = sbr.rel (%p237) target = $region12
      $region11: #{discriminator_forward.5} parent=5 // pred_region
        %s241 = ssub.s32 %s18, 1
        // Predicated region
        $region13: #{discriminator_forward.5} parent=11 // pred_check
          %p242 = pneg %p65
        $region14: #{discriminator_forward.5} parent=11 // pred_check_branch
          %244 = sbr.rel (%p242) target = $region16
        $region15: #{discriminator_forward.5} parent=11 // pred_region
          _
        $region16: #{discriminator_forward.5} parent=11 // pred_fallthru
          _
        // Predicated region
        $region17: #{discriminator_forward.5} parent=11 // pred_check
          %p245 = pneg %p86
        $region18: #{discriminator_forward.5} parent=11 // pred_check_branch
          %247 = sbr.rel (%p245) target = $region20
        $region19: #{discriminator_forward.5} parent=11 // pred_region
          _
        $region20: #{discriminator_forward.5} parent=11 // pred_fallthru
          _
        // Predicated region
        $region21: #{discriminator_forward.5} parent=11 // pred_check
          %p248 = pneg %p107
        $region22: #{discriminator_forward.5} parent=11 // pred_check_branch
          %250 = sbr.rel (%p248) target = $region24
        $region23: #{discriminator_forward.5} parent=11 // pred_region
          _
        $region24: #{discriminator_forward.5} parent=11 // pred_fallthru
          _
        // Predicated region
        $region25: #{discriminator_forward.5} parent=11 // pred_check
          %p251 = pneg %p128
        $region26: #{discriminator_forward.5} parent=11 // pred_check_branch
          %253 = sbr.rel (%p251) target = $region28
        $region27: #{discriminator_forward.5} parent=11 // pred_region
          _
        $region28: #{discriminator_forward.5} parent=11 // pred_fallthru
          _
        // Predicated region
        $region29: #{discriminator_forward.5} parent=11 // pred_check
          %p254 = pneg %p149
        $region30: #{discriminator_forward.5} parent=11 // pred_check_branch
          %256 = sbr.rel (%p254) target = $region32
        $region31: #{discriminator_forward.5} parent=11 // pred_region
          _
        $region32: #{discriminator_forward.5} parent=11 // pred_fallthru
          _
      $region12: #{discriminator_forward.5} parent=5 // pred_fallthru
        _
      %p257 = scmp.lt.s32.totalorder %s18, 2
      // Predicated region
      $region33: #{discriminator_forward.5} parent=5 // pred_check
        %p258 = pneg %p257
      $region34: #{discriminator_forward.5} parent=5 // pred_check_branch
        %260 = sbr.rel (%p258) target = $region36
      $region35: #{discriminator_forward.5} parent=5 // pred_region
        // Predicated region
        $region37: #{discriminator_forward.5} parent=35 // pred_check
          %p261 = pneg %p38
        $region38: #{discriminator_forward.5} parent=35 // pred_check_branch
          %263 = sbr.rel (%p261) target = $region40
        $region39: #{discriminator_forward.5} parent=35 // pred_region
          %s264 = smul.u32 2, %s18
          %p265 = scmp.lt.s32.totalorder %s264, 3
          %s266 = scalar_select %p265, %s264, 3
          %s267 = smul.addr %s266, 4
          %s268 = smul.addr %s267, 4
          %s269 = scalar_lea.vmem %s0, %s268
          %s270 = smul.u32 2, %s18
        $region40: #{discriminator_forward.5} parent=35 // pred_fallthru
          _
      $region36: #{discriminator_forward.5} parent=5 // pred_fallthru
        _
      %p271 = scmp.le.s32.totalorder 1, %s18
      %p272 = scmp.lt.s32.totalorder %s18, 3
      %p273 = pnand %p271, %p272
      %p274 = pneg %p273
      // Predicated region
      $region41: #{discriminator_forward.5} parent=5 // pred_check
        _
      $region42: #{discriminator_forward.5} parent=5 // pred_check_branch
        %276 = sbr.rel (%p273) target = $region44
      $region43: #{discriminator_forward.5} parent=5 // pred_region
        %s277 = ssub.s32 %s18, 1
        %s278 = smul.u32 2, %s23
        %p279 = scmp.lt.s32.totalorder %s278, 3
        %s280 = scalar_select %p279, %s278, 3
        %s281 = smul.addr %s280, 4
        %s282 = smul.addr %s281, 4
        %s283 = scalar_lea.vmem %s0, %s282
        %p284 = pneg %p44
        %p285 = pneg %p41
        %p286 = pneg %p65
        %p287 = pneg %p62
        %p288 = pneg %p86
        %p289 = pneg %p83
        %p290 = pneg %p107
        %p291 = pneg %p104
        %p292 = pneg %p128
        %p293 = pneg %p125
        %p294 = pneg %p149
        %p295 = pneg %p146
        %p296 = pneg %p175
        %p297 = pneg %p172
        %s298 = sand.u32 %s162, 1
        %s299 = scalar_lea.sflag [#allocation3], %s298
        %s300 = sand.u32 %s162, 1
        %s301 = smul.addr %s300, 16
        %s302 = scalar_lea.vmem [#allocation2], %s301
        %p303 = pneg %p201
        %p304 = pneg %p198
        %p305 = scmp.lt.s32.totalorder %s23, 1
        %s306 = scalar_select %p305, %s23, 1
        %s307 = scalar_lea.vmem %s7, %s306
        %p308 = pneg %p227
        %p309 = pneg %p224
        %p310 = scmp.lt.s32.totalorder %s23, 1
        %s311 = scalar_select %p310, %s23, 1
        %s312 = scalar_lea.vmem %s8, %s311
        %s313 = smul.u32 2, %s23
        %p314 = scmp.lt.s32.totalorder %s313, 3
        %s315 = scalar_select %p314, %s313, 3
        %s316 = smul.addr %s315, 4
        %s317 = smul.addr %s316, 4
        %s318 = scalar_lea.vmem %s0, %s317
        %s319 = smul.u32 2, %s23
        %s320 = smul.u32 2, %s23
        %p321 = scmp.lt.s32.totalorder %s23, 1
        %s322 = scalar_select %p321, %s23, 1
        %s323 = scalar_lea.vmem %s7, %s322
        %p324 = scmp.lt.s32.totalorder %s23, 1
        %s325 = scalar_select %p324, %s23, 1
        %s326 = scalar_lea.vmem %s8, %s325
        %v328 = vld [vmem:[%s318] sm:$0xff]
        %v329 = vld [vmem:[%s318 + $0x8] sm:$0xff]
        %v330 = vld [vmem:[%s318 + $0x10] sm:$0xff]
        %v331 = vld [vmem:[%s318 + $0x18] sm:$0xff]
        %v332 = vld [vmem:[%s1] sm:$0xf]
        %v333 = vld [vmem:[%s1 + $0x4] sm:$0xf]
        %v334 = vld [vmem:[%s1 + $0x8] sm:$0xf]
        %v335 = vld [vmem:[%s1 + $0xc] sm:$0xf]
        %v336 = vld [vmem:[%s1 + $0x10] sm:$0xf]
        %v337 = vld [vmem:[%s1 + $0x14] sm:$0xf]
        %v338 = vld [vmem:[%s1 + $0x18] sm:$0xf]
        %v339 = vld [vmem:[%s1 + $0x1c] sm:$0xf]
        %v340 = vld [vmem:[%s1 + $0x20] sm:$0xf]
        %v341 = vld [vmem:[%s1 + $0x24] sm:$0xf]
        %v342 = vld [vmem:[%s1 + $0x28] sm:$0xf]
        %v343 = vld [vmem:[%s1 + $0x2c] sm:$0xf]
        %v344 = vld [vmem:[%s1 + $0x30] sm:$0xf]
        %v345 = vld [vmem:[%s1 + $0x34] sm:$0xf]
        %v346 = vld [vmem:[%s1 + $0x38] sm:$0xf]
        %v347 = vld [vmem:[%s1 + $0x3c] sm:$0xf]
        %v348 = vld [vmem:[%s1 + $0x40] sm:$0xf]
        %v349 = vld [vmem:[%s1 + $0x44] sm:$0xf]
        %v350 = vld [vmem:[%s1 + $0x48] sm:$0xf]
        %v351 = vld [vmem:[%s1 + $0x4c] sm:$0xf]
        %v352 = vld [vmem:[%s1 + $0x50] sm:$0xf]
        %v353 = vld [vmem:[%s1 + $0x54] sm:$0xf]
        %v354 = vld [vmem:[%s1 + $0x58] sm:$0xf]
        %v355 = vld [vmem:[%s1 + $0x5c] sm:$0xf]
        %v356 = vld [vmem:[%s1 + $0x60] sm:$0xf]
        %v357 = vld [vmem:[%s1 + $0x64] sm:$0xf]
        %v358 = vld [vmem:[%s1 + $0x68] sm:$0xf]
        %v359 = vld [vmem:[%s1 + $0x6c] sm:$0xf]
        %v360 = vld [vmem:[%s1 + $0x70] sm:$0xf]
        %v361 = vld [vmem:[%s1 + $0x74] sm:$0xf]
        %v362 = vld [vmem:[%s1 + $0x78] sm:$0xf]
        %v363 = vld [vmem:[%s1 + $0x7c] sm:$0xf]
        %v364 = vld [vmem:[%s1 + $0x80] sm:$0xf]
        %v365 = vld [vmem:[%s1 + $0x84] sm:$0xf]
        %v366 = vld [vmem:[%s1 + $0x88] sm:$0xf]
        %v367 = vld [vmem:[%s1 + $0x8c] sm:$0xf]
        %v368 = vld [vmem:[%s1 + $0x90] sm:$0xf]
        %v369 = vld [vmem:[%s1 + $0x94] sm:$0xf]
        %v370 = vld [vmem:[%s1 + $0x98] sm:$0xf]
        %v371 = vld [vmem:[%s1 + $0x9c] sm:$0xf]
        %v372 = vld [vmem:[%s1 + $0xa0] sm:$0xf]
        %v373 = vld [vmem:[%s1 + $0xa4] sm:$0xf]
        %v374 = vld [vmem:[%s1 + $0xa8] sm:$0xf]
        %v375 = vld [vmem:[%s1 + $0xac] sm:$0xf]
        %v376 = vld [vmem:[%s1 + $0xb0] sm:$0xf]
        %v377 = vld [vmem:[%s1 + $0xb4] sm:$0xf]
        %v378 = vld [vmem:[%s1 + $0xb8] sm:$0xf]
        %v379 = vld [vmem:[%s1 + $0xbc] sm:$0xf]
        %v380 = vld [vmem:[%s1 + $0xc0] sm:$0xf]
        %v381 = vld [vmem:[%s1 + $0xc4] sm:$0xf]
        %v382 = vld [vmem:[%s1 + $0xc8] sm:$0xf]
        %v383 = vld [vmem:[%s1 + $0xcc] sm:$0xf]
        %v384 = vld [vmem:[%s1 + $0xd0] sm:$0xf]
        %v385 = vld [vmem:[%s1 + $0xd4] sm:$0xf]
        %v386 = vld [vmem:[%s1 + $0xd8] sm:$0xf]
        %v387 = vld [vmem:[%s1 + $0xdc] sm:$0xf]
        %v388 = vld [vmem:[%s1 + $0xe0] sm:$0xf]
        %v389 = vld [vmem:[%s1 + $0xe4] sm:$0xf]
        %v390 = vld [vmem:[%s1 + $0xe8] sm:$0xf]
        %v391 = vld [vmem:[%s1 + $0xec] sm:$0xf]
        %v392 = vld [vmem:[%s1 + $0xf0] sm:$0xf]
        %v393 = vld [vmem:[%s1 + $0xf4] sm:$0xf]
        %v394 = vld [vmem:[%s1 + $0xf8] sm:$0xf]
        %v395 = vld [vmem:[%s1 + $0xfc] sm:$0xf]
        %v400 = vunpack.c.l.b16 %v328
        %v401 = vunpack.c.h.b16 %v328
        %v402 = vunpack.c.l.b16 %v329
        %v403 = vunpack.c.h.b16 %v329
        %v404 = vunpack.c.l.b16 %v330
        %v405 = vunpack.c.h.b16 %v330
        %v406 = vunpack.c.l.b16 %v331
        %v407 = vunpack.c.h.b16 %v331
        %v408 = vpack.c.b16 %v404, %v400
        %v409 = vpack.c.b16 %v405, %v401
        %v410 = vpack.c.b16 %v406, %v402
        %v411 = vpack.c.b16 %v407, %v403
        %v480 = vunpack.c.l.b16 %v332
        %v481 = vunpack.c.l.b16 %v333
        %v482 = vunpack.c.l.b16 %v334
        %v483 = vunpack.c.l.b16 %v335
        %v484 = vunpack.c.l.b16 %v336
        %v485 = vunpack.c.l.b16 %v337
        %v486 = vunpack.c.l.b16 %v338
        %v487 = vunpack.c.l.b16 %v339
        %v488 = vunpack.c.l.b16 %v340
        %v489 = vunpack.c.l.b16 %v341
        %v490 = vunpack.c.l.b16 %v342
        %v491 = vunpack.c.l.b16 %v343
        %v492 = vunpack.c.l.b16 %v344
        %v493 = vunpack.c.l.b16 %v345
        %v494 = vunpack.c.l.b16 %v346
        %v495 = vunpack.c.l.b16 %v347
        %v496 = vunpack.c.l.b16 %v348
        %v497 = vunpack.c.l.b16 %v349
        %v498 = vunpack.c.l.b16 %v350
        %v499 = vunpack.c.l.b16 %v351
        %v500 = vunpack.c.l.b16 %v352
        %v501 = vunpack.c.l.b16 %v353
        %v502 = vunpack.c.l.b16 %v354
        %v503 = vunpack.c.l.b16 %v355
        %v504 = vunpack.c.l.b16 %v356
        %v505 = vunpack.c.l.b16 %v357
        %v506 = vunpack.c.l.b16 %v358
        %v507 = vunpack.c.l.b16 %v359
        %v508 = vunpack.c.l.b16 %v360
        %v509 = vunpack.c.l.b16 %v361
        %v510 = vunpack.c.l.b16 %v362
        %v511 = vunpack.c.l.b16 %v363
        %v512 = vunpack.c.l.b16 %v364
        %v513 = vunpack.c.l.b16 %v365
        %v514 = vunpack.c.l.b16 %v366
        %v515 = vunpack.c.l.b16 %v367
        %v516 = vunpack.c.l.b16 %v368
        %v517 = vunpack.c.l.b16 %v369
        %v518 = vunpack.c.l.b16 %v370
        %v519 = vunpack.c.l.b16 %v371
        %v520 = vunpack.c.l.b16 %v372
        %v521 = vunpack.c.l.b16 %v373
        %v522 = vunpack.c.l.b16 %v374
        %v523 = vunpack.c.l.b16 %v375
        %v524 = vunpack.c.l.b16 %v376
        %v525 = vunpack.c.l.b16 %v377
        %v526 = vunpack.c.l.b16 %v378
        %v527 = vunpack.c.l.b16 %v379
        %v528 = vunpack.c.l.b16 %v380
        %v529 = vunpack.c.l.b16 %v381
        %v530 = vunpack.c.l.b16 %v382
        %v531 = vunpack.c.l.b16 %v383
        %v532 = vunpack.c.l.b16 %v384
        %v533 = vunpack.c.l.b16 %v385
        %v534 = vunpack.c.l.b16 %v386
        %v535 = vunpack.c.l.b16 %v387
        %v536 = vunpack.c.l.b16 %v388
        %v537 = vunpack.c.l.b16 %v389
        %v538 = vunpack.c.l.b16 %v390
        %v539 = vunpack.c.l.b16 %v391
        %v540 = vunpack.c.l.b16 %v392
        %v541 = vunpack.c.l.b16 %v393
        %v542 = vunpack.c.l.b16 %v394
        %v543 = vunpack.c.l.b16 %v395
        %v544 = vpack.c.b16 %v481, %v480
        %v545 = vpack.c.b16 %v483, %v482
        %v546 = vpack.c.b16 %v485, %v484
        %v547 = vpack.c.b16 %v487, %v486
        %v548 = vpack.c.b16 %v489, %v488
        %v549 = vpack.c.b16 %v491, %v490
        %v550 = vpack.c.b16 %v493, %v492
        %v551 = vpack.c.b16 %v495, %v494
        %v552 = vpack.c.b16 %v497, %v496
        %v553 = vpack.c.b16 %v499, %v498
        %v554 = vpack.c.b16 %v501, %v500
        %v555 = vpack.c.b16 %v503, %v502
        %v556 = vpack.c.b16 %v505, %v504
        %v557 = vpack.c.b16 %v507, %v506
        %v558 = vpack.c.b16 %v509, %v508
        %v559 = vpack.c.b16 %v511, %v510
        %v560 = vpack.c.b16 %v513, %v512
        %v561 = vpack.c.b16 %v515, %v514
        %v562 = vpack.c.b16 %v517, %v516
        %v563 = vpack.c.b16 %v519, %v518
        %v564 = vpack.c.b16 %v521, %v520
        %v565 = vpack.c.b16 %v523, %v522
        %v566 = vpack.c.b16 %v525, %v524
        %v567 = vpack.c.b16 %v527, %v526
        %v568 = vpack.c.b16 %v529, %v528
        %v569 = vpack.c.b16 %v531, %v530
        %v570 = vpack.c.b16 %v533, %v532
        %v571 = vpack.c.b16 %v535, %v534
        %v572 = vpack.c.b16 %v537, %v536
        %v573 = vpack.c.b16 %v539, %v538
        %v574 = vpack.c.b16 %v541, %v540
        %v575 = vpack.c.b16 %v543, %v542
        %608 = vmatprep.subr.bf16.mxu0 0
        %609 = vmatpush1.bf16.msra.mxu0 %v551
        %610 = vmatprep.subr.bf16.mxu0 0
        %611 = vmatpush1.bf16.msra.mxu0 %v550
        %612 = vmatprep.subr.bf16.mxu0 0
        %613 = vmatpush1.bf16.msra.mxu0 %v549
        %614 = vmatprep.subr.bf16.mxu0 0
        %615 = vmatpush1.bf16.msra.mxu0 %v548
        %616 = vmatprep.subr.bf16.mxu0 0
        %617 = vmatpush1.bf16.msra.mxu0 %v547
        %618 = vmatprep.subr.bf16.mxu0 0
        %619 = vmatpush1.bf16.msra.mxu0 %v546
        %620 = vmatprep.subr.bf16.mxu0 0
        %621 = vmatpush1.bf16.msra.mxu0 %v545
        %622 = vmatprep.subr.bf16.mxu0 0
        %623 = vmatpush1.bf16.msra.mxu0 %v544
        %624 = vmatprep.subr.bf16.mxu0 0
        %625 = vmatpush2.bf16.msra.mxu0 %v559
        %626 = vmatprep.subr.bf16.mxu0 0
        %627 = vmatpush2.bf16.msra.mxu0 %v558
        %628 = vmatprep.subr.bf16.mxu0 0
        %629 = vmatpush2.bf16.msra.mxu0 %v557
        %630 = vmatprep.subr.bf16.mxu0 0
        %631 = vmatpush2.bf16.msra.mxu0 %v556
        %632 = vmatprep.subr.bf16.mxu0 0
        %633 = vmatpush2.bf16.msra.mxu0 %v555
        %634 = vmatprep.subr.bf16.mxu0 0
        %635 = vmatpush2.bf16.msra.mxu0 %v554
        %636 = vmatprep.subr.bf16.mxu0 0
        %637 = vmatpush2.bf16.msra.mxu0 %v553
        %638 = vmatprep.subr.bf16.mxu0 0
        %639 = vmatpush2.bf16.msra.mxu0 %v552
        %640 = vmatprep.mubr.bf16.mxu0 %v409
        %641 = vmatmul.mubr.bf16.gmra.mxu0 %v408
        %v642 = vpop.f32.mrf.mxu0
        %v643 = vadd.f32 0.0, %v642
        %v644 = vpop.f32.mrf.mxu0
        %v645 = vpop.f32.mrf.mxu0
        %v646 = vadd.f32 0.0, %v645
        %v647 = vpop.f32.mrf.mxu0
        %648 = vdwg.mxu0
        %649 = vmatprep.subr.bf16.mxu0 0
        %650 = vmatpush1.bf16.msra.mxu0 %v567
        %651 = vmatprep.subr.bf16.mxu0 0
        %652 = vmatpush1.bf16.msra.mxu0 %v566
        %653 = vmatprep.subr.bf16.mxu0 0
        %654 = vmatpush1.bf16.msra.mxu0 %v565
        %655 = vmatprep.subr.bf16.mxu0 0
        %656 = vmatpush1.bf16.msra.mxu0 %v564
        %657 = vmatprep.subr.bf16.mxu0 0
        %658 = vmatpush1.bf16.msra.mxu0 %v563
        %659 = vmatprep.subr.bf16.mxu0 0
        %660 = vmatpush1.bf16.msra.mxu0 %v562
        %661 = vmatprep.subr.bf16.mxu0 0
        %662 = vmatpush1.bf16.msra.mxu0 %v561
        %663 = vmatprep.subr.bf16.mxu0 0
        %664 = vmatpush1.bf16.msra.mxu0 %v560
        %665 = vmatprep.subr.bf16.mxu0 0
        %666 = vmatpush2.bf16.msra.mxu0 %v575
        %667 = vmatprep.subr.bf16.mxu0 0
        %668 = vmatpush2.bf16.msra.mxu0 %v574
        %669 = vmatprep.subr.bf16.mxu0 0
        %670 = vmatpush2.bf16.msra.mxu0 %v573
        %671 = vmatprep.subr.bf16.mxu0 0
        %672 = vmatpush2.bf16.msra.mxu0 %v572
        %673 = vmatprep.subr.bf16.mxu0 0
        %674 = vmatpush2.bf16.msra.mxu0 %v571
        %675 = vmatprep.subr.bf16.mxu0 0
        %676 = vmatpush2.bf16.msra.mxu0 %v570
        %677 = vmatprep.subr.bf16.mxu0 0
        %678 = vmatpush2.bf16.msra.mxu0 %v569
        %679 = vmatprep.subr.bf16.mxu0 0
        %680 = vmatpush2.bf16.msra.mxu0 %v568
        %681 = vmatprep.mubr.bf16.mxu0 %v411
        %682 = vmatmul.mubr.bf16.gmra.mxu0 %v410
        %v683 = vpop.f32.mrf.mxu0
        %v684 = vadd.f32 %v643, %v683
        %v685 = vpop.f32.mrf.mxu0
        %v686 = vpop.f32.mrf.mxu0
        %v687 = vadd.f32 %v646, %v686
        %v688 = vpop.f32.mrf.mxu0
        %689 = vdwg.mxu0
        %vm690 = vcmask 523264
        %v691 = vsel %vm690, %v684, 0.0
        %v692 = vsel %vm690, %v687, 0.0
        %v693 = vadd.f32 %v691, %v692
        %v694 = vrot.slane %v693, 4
        %v695 = vadd.f32 %v693, %v694
        %v696 = vrot.slane %v695, 2
        %v697 = vadd.f32 %v695, %v696
        %v698 = vrot.slane %v697, 1
        %v699 = vadd.f32 %v697, %v698
        %v700 = vmul.f32 %v699, 0.0625
        %v701 = vmul.f32 %v684, %v684
        %v702 = vmul.f32 %v687, %v687
        %v703 = vsel %vm690, %v701, 0.0
        %v704 = vsel %vm690, %v702, 0.0
        %v705 = vadd.f32 %v703, %v704
        %v706 = vrot.slane %v705, 4
        %v707 = vadd.f32 %v705, %v706
        %v708 = vrot.slane %v707, 2
        %v709 = vadd.f32 %v707, %v708
        %v710 = vrot.slane %v709, 1
        %v711 = vadd.f32 %v709, %v710
        %v712 = vmul.f32 %v711, 0.0625
        %v713 = vmul.f32 %v700, %v700
        %v714 = vsub.f32 %v712, %v713
        %v715 = vmax.f32 %v714, 0.0
        %v716 = vsub.f32 %v684, %v700
        %v717 = vsub.f32 %v687, %v700
        %v718 = vadd.f32 %v715, 1e-05
        %v719 = vrsqrt.pop %v718
        %v720 = vmul.f32 %v716, %v719
        %v721 = vmul.f32 %v717, %v719
        %v722 = vld [vmem:[%s2] sm:$0x1]
        %v724 = vlaneseq
        %v725 = vshrl.u32 %v724, 7
        %v726 = vsub.s32 0, %v725
        %v727 = vrot.slane %v722, %v726
        %v729 = vmul.f32 %v720, %v727
        %v730 = vmul.f32 %v721, %v727
        %v731 = vld [vmem:[%s3] sm:$0x1]
        %v733 = vlaneseq
        %v734 = vshrl.u32 %v733, 7
        %v735 = vsub.s32 0, %v734
        %v736 = vrot.slane %v731, %v735
        %v738 = vadd.f32 %v729, %v736
        %v739 = vadd.f32 %v730, %v736
        %vm740 = vcmp.ge.f32.partialorder %v738, 0.0
        %vm741 = vcmp.ge.f32.partialorder %v739, 0.0
        %v742 = vmul.f32 %v738, 0.2
        %v743 = vmul.f32 %v739, 0.2
        %v744 = vsel %vm740, %v738, %v742
        %v745 = vsel %vm741, %v739, %v743
        %746 = vst.msk [vmem:[%s302] sm:$0xff] %vm690, %v744
        %747 = vst.msk [vmem:[%s302 + $0x8] sm:$0xff] %vm690, %v745
        %v748 = vld [vmem:[%s4] sm:$0xff]
        %v749 = vld [vmem:[%s4 + $0x8] sm:$0xff]
        %v750 = vmul.f32 %v744, %v748
        %v751 = vmul.f32 %v745, %v749
        %v752 = vsel %vm690, %v750, 0.0
        %v753 = vsel %vm690, %v751, 0.0
        %v754 = vadd.f32 %v752, %v753
        %755 = vadd.xlane.f32.xlu0 %v754
        %v756 = vpop.xlane.xlu0 %755
        %v757 = vrot.slane %v756, 4
        %v758 = vadd.f32 %v756, %v757
        %v759 = vrot.slane %v758, 2
        %v760 = vadd.f32 %v758, %v759
        %v761 = vrot.slane %v760, 1
        %v762 = vadd.f32 %v760, %v761
        %s763 = vtos %v762
        %v764 = vstv %s763
        %vm765 = vcmask 0
        %766 = vst.msk [vmem:[%s323] sm:$0x1] %vm765, %v764
        %v767 = vld [vmem:[%s5] sm:$0xff]
        %v768 = vld [vmem:[%s5 + $0x8] sm:$0xff]
        %v769 = vmul.f32 %v744, %v767
        %v770 = vmul.f32 %v745, %v768
        %v771 = vsel %vm690, %v769, 0.0
        %v772 = vsel %vm690, %v770, 0.0
        %v773 = vadd.f32 %v771, %v772
        %774 = vadd.xlane.f32.xlu0 %v773
        %v775 = vpop.xlane.xlu0 %774
        %v776 = vrot.slane %v775, 4
        %v777 = vadd.f32 %v775, %v776
        %v778 = vrot.slane %v777, 2
        %v779 = vadd.f32 %v777, %v778
        %v780 = vrot.slane %v779, 1
        %v781 = vadd.f32 %v779, %v780
        %s782 = vtos %v781
        %v783 = vstv %s782
        %784 = vst.msk [vmem:[%s326] sm:$0x1] %vm765, %v783
        %s785 = sand.u32 %s162, 1
        %s786 = scalar_lea.sflag [#allocation3], %s785
        %s787 = sand.u32 %s162, 1
        %s788 = smul.addr %s787, 16
        %s789 = scalar_lea.vmem [#allocation2], %s788
        %p790 = scmp.lt.s32.totalorder %s23, 1
        %s791 = scalar_select %p790, %s23, 1
        %s792 = scalar_lea.vmem %s7, %s791
        %p793 = scmp.lt.s32.totalorder %s23, 1
        %s794 = scalar_select %p793, %s23, 1
        %s795 = scalar_lea.vmem %s8, %s794
        // Predicated region
        $region45: #{discriminator_forward.5} parent=43 // pred_check
          %p796 = pneg %p172
        $region46: #{discriminator_forward.5} parent=43 // pred_check_branch
          %798 = sbr.rel (%p796) target = $region48
        $region47: #{discriminator_forward.5} parent=43 // pred_region
          %s799 = smul.u32 2, %s23
          %s801 = ssub.s32 256, 256
          %802 = vsyncadd %s786, %s801
          %s803 = smul.addr %s799, 128
          %s804 = scalar_lea.hbm %s6, %s803
          %s805 = sshll.u32 %s789, 4
          %s806 = int_to_ptr.vmem [resolvable:$true] %s805
          %811 = dma.vmem_to_hbm [thread:$0]  %s806, 256, %s804, %s786, 128, 128, 8
        $region48: #{discriminator_forward.5} parent=43 // pred_fallthru
          _
        // Predicated region
        $region49: #{discriminator_forward.5} parent=43 // pred_check
          %p812 = pneg %p198
        $region50: #{discriminator_forward.5} parent=43 // pred_check_branch
          %814 = sbr.rel (%p812) target = $region52
        $region51: #{discriminator_forward.5} parent=43 // pred_region
          _
        $region52: #{discriminator_forward.5} parent=43 // pred_fallthru
          _
        // Predicated region
        $region53: #{discriminator_forward.5} parent=43 // pred_check
          %p815 = pneg %p224
        $region54: #{discriminator_forward.5} parent=43 // pred_check_branch
          %817 = sbr.rel (%p815) target = $region56
        $region55: #{discriminator_forward.5} parent=43 // pred_region
          _
        $region56: #{discriminator_forward.5} parent=43 // pred_fallthru
          _
      $region44: #{discriminator_forward.5} parent=5 // pred_fallthru
        _
      %p818 = scmp.le.s32.totalorder 2, %s18
      // Predicated region
      $region57: #{discriminator_forward.5} parent=5 // pred_check
        %p819 = pneg %p818
      $region58: #{discriminator_forward.5} parent=5 // pred_check_branch
        %821 = sbr.rel (%p819) target = $region60
      $region59: #{discriminator_forward.5} parent=5 // pred_region
        %s822 = ssub.s32 %s18, 2
        // Predicated region
        $region61: #{discriminator_forward.5} parent=59 // pred_check
          %p823 = pneg %p178
        $region62: #{discriminator_forward.5} parent=59 // pred_check_branch
          %825 = sbr.rel (%p823) target = $region64
        $region63: #{discriminator_forward.5} parent=59 // pred_region
          %s826 = sand.u32 %s163, 1
          %s827 = scalar_lea.sflag [#allocation3], %s826
          %s828 = sand.u32 %s163, 1
          %s829 = smul.addr %s828, 16
          %s830 = scalar_lea.vmem [#allocation2], %s829
          %831 = dma.done %s827, 256
        $region64: #{discriminator_forward.5} parent=59 // pred_fallthru
          _
        // Predicated region
        $region65: #{discriminator_forward.5} parent=59 // pred_check
          %p832 = pneg %p204
        $region66: #{discriminator_forward.5} parent=59 // pred_check_branch
          %834 = sbr.rel (%p832) target = $region68
        $region67: #{discriminator_forward.5} parent=59 // pred_region
          %p835 = scmp.lt.s32.totalorder %s24, 1
          %s836 = scalar_select %p835, %s24, 1
          %s837 = scalar_lea.vmem %s7, %s836
        $region68: #{discriminator_forward.5} parent=59 // pred_fallthru
          _
        // Predicated region
        $region69: #{discriminator_forward.5} parent=59 // pred_check
          %p838 = pneg %p230
        $region70: #{discriminator_forward.5} parent=59 // pred_check_branch
          %840 = sbr.rel (%p838) target = $region72
        $region71: #{discriminator_forward.5} parent=59 // pred_region
          %p841 = scmp.lt.s32.totalorder %s24, 1
          %s842 = scalar_select %p841, %s24, 1
          %s843 = scalar_lea.vmem %s8, %s842
        $region72: #{discriminator_forward.5} parent=59 // pred_fallthru
          _
      $region60: #{discriminator_forward.5} parent=5 // pred_fallthru
        _
    $region6: #{discriminator_forward.5} parent=1 // loop_footer
      %s22 = sadd.s32 1, %s18
    $region7: #{discriminator_forward.5} parent=1 // loop_footer_branch
      %17 = sbr.rel target = $region3
    $region8: #{discriminator_forward.5} parent=1 // loop_exit
      _
    %844 = vsyncpa [#allocation3], 1
    %s845 = scalar_lea.sflag [#allocation3], 1
    %846 = vsyncpa %s845, 1

</llo_original>
